<compile_context>
chip_gen: v7x
topology: tpu7x:2x2x1
jax: 0.10.0
libtpu: 0.0.40
codegen_flags: <defaults>
</compile_context>

<pallas_src>
import functools

import jax
import jax.numpy as jnp
from jax import lax
from jax.experimental import pallas as pl
from jax.experimental.pallas import tpu as pltpu


# ---------------------------------------------------------------------------
# Pallas kernels
# ---------------------------------------------------------------------------

def _concat_tap_kernel(x_ref, w_ref, scale_ref, bias_ref, o_ref, *,
                       Wp, M_tile, KH, KW):
    """In-VMEM im2col: concat KH*KW shifted slices along lanes, one big-K dot.

    x_ref:     (1, 1, L_tile, C_in)    bf16  integer-grid (0..15) activations
    w_ref:     (KH*KW*C_in, C_pad)     bf16  sign(w) taps, (kh, kw, ci) order
    scale_ref: (1, C_pad)              f32   step_a*step_w*gamma/sqrt(var+eps)
    bias_ref:  (1, C_pad)              f32   beta - mean*gamma/sqrt(var+eps)
    o_ref:     (1, 1, M_tile, C_pad)   bf16
    """
    taps = [x_ref[0, 0, pl.ds(kh * Wp + kw, M_tile), :]
            for kh in range(KH) for kw in range(KW)]
    lhs = taps[0] if len(taps) == 1 else jnp.concatenate(taps, axis=-1)
    acc = jnp.dot(lhs, w_ref[...], preferred_element_type=jnp.float32)
    y = acc * scale_ref[...] + bias_ref[...]
    o_ref[0, 0] = jnp.maximum(y, 0.0).astype(o_ref.dtype)   # single store


def _shift_add_kernel(x_ref, w_ref, scale_ref, bias_ref, o_ref, *,
                      Wp, M_tile, KH, KW):
    """Shift-and-add conv for large C_in: 9 dots accumulated in registers.

    x_ref: (1, 1, L_tile, C_in)   w_ref: (KH*KW, C_in, C_pad)
    """
    acc = None
    for kh in range(KH):
        for kw in range(KW):
            lhs = x_ref[0, 0, pl.ds(kh * Wp + kw, M_tile), :]
            part = jnp.dot(lhs, w_ref[kh * KW + kw],
                           preferred_element_type=jnp.float32)
            acc = part if acc is None else acc + part
    y = acc * scale_ref[...] + bias_ref[...]
    o_ref[0, 0] = jnp.maximum(y, 0.0).astype(o_ref.dtype)   # single store


# ---------------------------------------------------------------------------
# Tiling helpers
# ---------------------------------------------------------------------------

_TILE_VMEM_BUDGET = 20 * 1024 * 1024    # conservative per-step block budget
_VMEM_LIMIT_BYTES = 32 * 1024 * 1024    # <= scoped default on v6e/v7x, safe on v5e


def _tile_vmem_bytes(R, Wp, C_in, C_pad, KH, KW):
    L_tile = (R + KH - 1) * Wp + (KW - 1)
    M_tile = R * Wp
    in_blk = L_tile * C_in * 2           # bf16 activations
    out_blk = M_tile * C_pad * 2         # bf16 output
    w_blk = KH * KW * C_in * C_pad * 2   # bf16 weight taps
    vec_blk = 2 * C_pad * 4              # f32 scale + bias
    return 2 * (in_blk + out_blk + w_blk + vec_blk)   # double-buffered


def _pick_rows_per_tile(H_out, Wp, C_in, C_pad, KH, KW):
    """Largest divisor of H_out whose per-step blocks fit the VMEM budget."""
    for R in sorted((d for d in range(1, H_out + 1) if H_out % d == 0),
                    reverse=True):
        if _tile_vmem_bytes(R, Wp, C_in, C_pad, KH, KW) <= _TILE_VMEM_BUDGET:
            return R
    return 1


# ---------------------------------------------------------------------------
# Forward pass
# ---------------------------------------------------------------------------

def basic_block_1w4a_forward(x, params, stride=1, force_shift_add=False,
                             out_dtype=jnp.bfloat16):
    """x: (N, C_in, H, W) float32 -> (N, C_out, H_out, W_out) out_dtype."""
    w = params["conv_w"]                                  # (C_out, C_in, 3, 3)
    C_out, C_in, KH, KW = w.shape
    N, _, H, W = x.shape
    pad = 1
    H_out = (H + 2 * pad - KH) // stride + 1
    W_out = (W + 2 * pad - KW) // stride + 1
    Hp, Wp = H + 2 * pad, W + 2 * pad

    step_a = params["step_a"].astype(jnp.float32)
    step_w = params["step_w"].astype(jnp.float32)

    # ---- activation fake-quant done ONCE; exact integer grid (0..15) in bf16 ----
    x_nhwc = jnp.transpose(x, (0, 2, 3, 1)).astype(jnp.float32)
    q = jnp.clip(jnp.round(x_nhwc / step_a), 0.0, 15.0).astype(jnp.bfloat16)
    q = jnp.pad(q, ((0, 0), (pad, pad), (pad, pad), (0, 0)))   # conv zero pad

    # ---- binarize weights once; fold LSQ steps + BN into one per-channel affine ----
    C_pad = ((C_out + 127) // 128) * 128        # lane-dense output stores
    # TODO(synk): jnp.sign maps w==0 -> 0 (ternary); a strict 1-bit LSQ quantizer
    # may map 0 -> +1 instead.  Matches the in-file reference.
    w_sign = jnp.sign(w).astype(jnp.bfloat16)
    w_khwc = jnp.transpose(w_sign, (2, 3, 1, 0))            # (KH, KW, C_in, C_out)

    eps = 1e-5
    g = params["bn_gamma"].astype(jnp.float32) / jnp.sqrt(
        params["bn_var"].astype(jnp.float32) + eps)
    scale = step_a * step_w * g
    bias = (params["bn_beta"].astype(jnp.float32)
            - params["bn_mean"].astype(jnp.float32) * g)
    scale = jnp.pad(scale, (0, C_pad - C_out)).reshape(1, C_pad)
    bias = jnp.pad(bias, (0, C_pad - C_out)).reshape(1, C_pad)

    use_concat = (not force_shift_add) and (C_in < 128)

    if stride == 1:
        # Row tiling with a (KH-1)-row halo; flattened (rows*Wp, C_in) windows.
        R = _pick_rows_per_tile(H_out, Wp, C_in, C_pad, KH, KW)
        n_tiles = H_out // R
        M_tile = R * Wp                      # includes (Wp - W_out) junk cols/row
        L_tile = (R + KH - 1) * Wp + (KW - 1)
        q_flat = q.reshape(N, Hp * Wp, C_in)
        L_need = (n_tiles - 1) * R * Wp + L_tile
        if L_need > Hp * Wp:
            q_flat = jnp.pad(q_flat, ((0, 0), (0, L_need - Hp * Wp), (0, 0)))
        x_tiles = jnp.stack(
            [lax.dynamic_slice_in_dim(q_flat, t * R * Wp, L_tile, axis=1)
             for t in range(n_tiles)], axis=1)   # (N, n_tiles, L_tile, C_in)
        kern_Wp, kern_KH, kern_KW = Wp, KH, KW
    else:
        # stride > 1: wrapper-side strided im2col (no strided sublane loads,
        # exact W_out columns — no junk compute); kernel is one matmul + affine.
        # TODO(synk): this fallback path is not row-tiled.
        patches = [q[:, kh:kh + stride * H_out:stride,
                     kw:kw + stride * W_out:stride, :]
                   for kh in range(KH) for kw in range(KW)]
        slab = jnp.concatenate(patches, axis=-1)          # (N, H_out, W_out, 9*C_in)
        M_tile = H_out * W_out
        L_tile = M_tile
        x_tiles = slab.reshape(N, 1, M_tile, KH * KW * C_in)
        n_tiles = 1
        kern_Wp, kern_KH, kern_KW = 1, 1, 1
        use_concat = True                                  # taps already folded in K

    if use_concat:
        w_oper = w_khwc.reshape(KH * KW * C_in, C_out)
        w_oper = jnp.pad(w_oper, ((0, 0), (0, C_pad - C_out)))
        kernel = functools.partial(_concat_tap_kernel, Wp=kern_Wp,
                                   M_tile=M_tile, KH=kern_KH, KW=kern_KW)
        w_spec = pl.BlockSpec((KH * KW * C_in, C_pad), lambda n, t: (0, 0))
    else:
        w_oper = w_khwc.reshape(KH * KW, C_in, C_out)
        w_oper = jnp.pad(w_oper, ((0, 0), (0, 0), (0, C_pad - C_out)))
        kernel = functools.partial(_shift_add_kernel, Wp=kern_Wp,
                                   M_tile=M_tile, KH=kern_KH, KW=kern_KW)
        w_spec = pl.BlockSpec((KH * KW, C_in, C_pad), lambda n, t: (0, 0, 0))

    # TODO(synk): for very small C_out the 128-lane channel pad still inflates
    # writeback ~16x; packing images/row-tiles into the lane dim (or fusing the
    # next block) would remove it.  For production C_out >= 128 this is moot.
    out = pl.pallas_call(
        kernel,
        out_shape=jax.ShapeDtypeStruct((N, n_tiles, M_tile, C_pad), out_dtype),
        grid=(N, n_tiles),
        in_specs=[
            pl.BlockSpec((1, 1, L_tile, x_tiles.shape[-1]),
                         lambda n, t: (n, t, 0, 0)),                  # activations
            w_spec,                                                   # weights
            pl.BlockSpec((1, C_pad), lambda n, t: (0, 0)),            # scale
            pl.BlockSpec((1, C_pad), lambda n, t: (0, 0)),            # bias
        ],
        out_specs=pl.BlockSpec((1, 1, M_tile, C_pad),
                               lambda n, t: (n, t, 0, 0)),
        compiler_params=pltpu.CompilerParams(
            dimension_semantics=("parallel", "parallel"),
            vmem_limit_bytes=_VMEM_LIMIT_BYTES),
    )(x_tiles, w_oper, scale, bias)

    if stride == 1:
        out = out.reshape(N, n_tiles * R, Wp, C_pad)[:, :H_out, :W_out, :C_out]
    else:
        out = out.reshape(N, H_out, W_out, C_pad)[:, :, :, :C_out]
    return jnp.transpose(out, (0, 3, 1, 2))


# ---------------------------------------------------------------------------
# Pure-JAX reference and demo
# ---------------------------------------------------------------------------

def _reference_forward(x, params, stride=1):
    """Pure-JAX reference with identical semantics (for verification)."""
    sa = params["step_a"]
    sw = params["step_w"]
    x_q = jnp.clip(jnp.round(x / sa), 0.0, 15.0) * sa
    w_q = jnp.sign(params["conv_w"]) * sw
    y = lax.conv_general_dilated(
        x_q, w_q, window_strides=(stride, stride),
        padding=((1, 1), (1, 1)),
        dimension_numbers=("NCHW", "OIHW", "NCHW"))
    eps = 1e-5
    inv_std = 1.0 / jnp.sqrt(params["bn_var"] + eps)
    scale = (params["bn_gamma"] * inv_std)[None, :, None, None]
    bias = (params["bn_beta"] - params["bn_mean"] * params["bn_gamma"] * inv_std
            )[None, :, None, None]
    return jnp.maximum(y * scale + bias, 0.0)


def make_params(key, in_planes, planes):
    ks = jax.random.split(key, 6)
    conv_w = jax.random.normal(ks[0], (planes, in_planes, 3, 3), jnp.float32) * 0.1
    return {
        "conv_w": conv_w,
        "step_a": jnp.float32(0.125),                 # LSQ activation step size
        "step_w": jnp.float32(0.05),                  # LSQ weight step size
        "bn_gamma": 1.0 + 0.1 * jax.random.normal(ks[1], (planes,), jnp.float32),
        "bn_beta": 0.1 * jax.random.normal(ks[2], (planes,), jnp.float32),
        "bn_mean": 0.1 * jax.random.normal(ks[3], (planes,), jnp.float32),
        "bn_var": 1.0 + 0.1 * jax.random.uniform(ks[4], (planes,), jnp.float32),
    }


if __name__ == "__main__":
    key = jax.random.PRNGKey(0)
    k_x, k_p = jax.random.split(key)

    N, C_in, H, W = 2, 4, 16, 16
    planes = 8

    # activations are quantized to an unsigned 4-bit grid; use a non-negative-ish
    # range so the quantizer is exercised meaningfully.
    x = jnp.abs(jax.random.normal(k_x, (N, C_in, H, W), jnp.float32))
    params = make_params(k_p, C_in, planes)

    # stride=1, small-C_in path: in-VMEM im2col, single K=36 dot
    fwd1 = jax.jit(functools.partial(basic_block_1w4a_forward, stride=1))
    out1 = jax.block_until_ready(fwd1(x, params))
    ref1 = _reference_forward(x, params, stride=1)
    assert out1.shape == (N, planes, H, W), out1.shape
    err1 = float(jnp.max(jnp.abs(out1.astype(jnp.float32) - ref1)))
    assert err1 < 1e-2, err1

    # stride=1, shift-and-add path (9 dots accumulated in registers, one store)
    fwd1b = jax.jit(functools.partial(basic_block_1w4a_forward, stride=1,
                                      force_shift_add=True))
    out1b = jax.block_until_ready(fwd1b(x, params))
    err1b = float(jnp.max(jnp.abs(out1b.astype(jnp.float32) - ref1)))
    assert err1b < 1e-2, err1b

    # stride=2 path (wrapper-side strided im2col, one dot in-kernel)
    fwd2 = jax.jit(functools.partial(basic_block_1w4a_forward, stride=2))
    out2 = jax.block_until_ready(fwd2(x, params))
    ref2 = _reference_forward(x, params, stride=2)
    assert out2.shape == (N, planes, H // 2, W // 2), out2.shape
    err2 = float(jnp.max(jnp.abs(out2.astype(jnp.float32) - ref2)))
    assert err2 < 1e-2, err2

    # TODO(synk): BatchNorm is implemented in inference (running-stats) form;
    # PyTorch training-mode batch statistics are not reproduced here.
    print("KERNEL_OK")
</pallas_src>

<mosaic_0001>
module attributes {stable_mosaic.version = 11 : i64} {
  func.func @_concat_tap_kernel(%arg0: i32, %arg1: i32, %arg2: memref<1x1x326x4xbf16, #tpu.memory_space<vmem>>, %arg3: memref<36x128xbf16, #tpu.memory_space<vmem>>, %arg4: memref<1x128xf32, #tpu.memory_space<vmem>>, %arg5: memref<1x128xf32, #tpu.memory_space<vmem>>, %arg6: memref<1x1x288x128xbf16, #tpu.memory_space<vmem>>) attributes {dimension_semantics = [#tpu.dimension_semantics<parallel>, #tpu.dimension_semantics<parallel>], iteration_bounds = array<i64: 2, 1>, scalar_prefetch = 0 : i64, scratch_operands = 0 : i64, tpu.core_type = #tpu.core_type<tc>, window_params = [{transform_indices = @transform_0, window_bounds = array<i64: 1, 1, 326, 4>}, {pipeline_mode = #tpu.pipeline_mode<synchronous>, transform_indices = @transform_1, window_bounds = array<i64: 36, 128>}, {pipeline_mode = #tpu.pipeline_mode<synchronous>, transform_indices = @transform_2, window_bounds = array<i64: 1, 128>}, {pipeline_mode = #tpu.pipeline_mode<synchronous>, transform_indices = @transform_3, window_bounds = array<i64: 1, 128>}, {transform_indices = @transform_4, window_bounds = array<i64: 1, 1, 288, 128>}]} {
    %c0 = arith.constant 0 : index
    %c0_0 = arith.constant 0 : index
    %c0_1 = arith.constant 0 : index
    %c0_2 = arith.constant 0 : index
    %0 = vector.load %arg2[%c0, %c0_0, %c0_1, %c0_2] : memref<1x1x326x4xbf16, #tpu.memory_space<vmem>>, vector<1x1x288x4xbf16>
    %1 = vector.shape_cast %0 : vector<1x1x288x4xbf16> to vector<288x4xbf16>
    %c0_3 = arith.constant 0 : index
    %c0_4 = arith.constant 0 : index
    %c1 = arith.constant 1 : index
    %c0_5 = arith.constant 0 : index
    %2 = vector.load %arg2[%c0_3, %c0_4, %c1, %c0_5] : memref<1x1x326x4xbf16, #tpu.memory_space<vmem>>, vector<1x1x288x4xbf16>
    %3 = vector.shape_cast %2 : vector<1x1x288x4xbf16> to vector<288x4xbf16>
    %c0_6 = arith.constant 0 : index
    %c0_7 = arith.constant 0 : index
    %c2 = arith.constant 2 : index
    %c0_8 = arith.constant 0 : index
    %4 = vector.load %arg2[%c0_6, %c0_7, %c2, %c0_8] : memref<1x1x326x4xbf16, #tpu.memory_space<vmem>>, vector<1x1x288x4xbf16>
    %5 = vector.shape_cast %4 : vector<1x1x288x4xbf16> to vector<288x4xbf16>
    %c0_9 = arith.constant 0 : index
    %c0_10 = arith.constant 0 : index
    %c18 = arith.constant 18 : index
    %c0_11 = arith.constant 0 : index
    %6 = vector.load %arg2[%c0_9, %c0_10, %c18, %c0_11] : memref<1x1x326x4xbf16, #tpu.memory_space<vmem>>, vector<1x1x288x4xbf16>
    %7 = vector.shape_cast %6 : vector<1x1x288x4xbf16> to vector<288x4xbf16>
    %c0_12 = arith.constant 0 : index
    %c0_13 = arith.constant 0 : index
    %c19 = arith.constant 19 : index
    %c0_14 = arith.constant 0 : index
    %8 = vector.load %arg2[%c0_12, %c0_13, %c19, %c0_14] : memref<1x1x326x4xbf16, #tpu.memory_space<vmem>>, vector<1x1x288x4xbf16>
    %9 = vector.shape_cast %8 : vector<1x1x288x4xbf16> to vector<288x4xbf16>
    %c0_15 = arith.constant 0 : index
    %c0_16 = arith.constant 0 : index
    %c20 = arith.constant 20 : index
    %c0_17 = arith.constant 0 : index
    %10 = vector.load %arg2[%c0_15, %c0_16, %c20, %c0_17] : memref<1x1x326x4xbf16, #tpu.memory_space<vmem>>, vector<1x1x288x4xbf16>
    %11 = vector.shape_cast %10 : vector<1x1x288x4xbf16> to vector<288x4xbf16>
    %c0_18 = arith.constant 0 : index
    %c0_19 = arith.constant 0 : index
    %c36 = arith.constant 36 : index
    %c0_20 = arith.constant 0 : index
    %12 = vector.load %arg2[%c0_18, %c0_19, %c36, %c0_20] : memref<1x1x326x4xbf16, #tpu.memory_space<vmem>>, vector<1x1x288x4xbf16>
    %13 = vector.shape_cast %12 : vector<1x1x288x4xbf16> to vector<288x4xbf16>
    %c0_21 = arith.constant 0 : index
    %c0_22 = arith.constant 0 : index
    %c37 = arith.constant 37 : index
    %c0_23 = arith.constant 0 : index
    %14 = vector.load %arg2[%c0_21, %c0_22, %c37, %c0_23] : memref<1x1x326x4xbf16, #tpu.memory_space<vmem>>, vector<1x1x288x4xbf16>
    %15 = vector.shape_cast %14 : vector<1x1x288x4xbf16> to vector<288x4xbf16>
    %c0_24 = arith.constant 0 : index
    %c0_25 = arith.constant 0 : index
    %c38 = arith.constant 38 : index
    %c0_26 = arith.constant 0 : index
    %16 = vector.load %arg2[%c0_24, %c0_25, %c38, %c0_26] : memref<1x1x326x4xbf16, #tpu.memory_space<vmem>>, vector<1x1x288x4xbf16>
    %17 = vector.shape_cast %16 : vector<1x1x288x4xbf16> to vector<288x4xbf16>
    %18 = tpu.concatenate %1, %3, %5, %7, %9, %11, %13, %15, %17 in 1 : vector<288x4xbf16>, vector<288x4xbf16>, vector<288x4xbf16>, vector<288x4xbf16>, vector<288x4xbf16>, vector<288x4xbf16>, vector<288x4xbf16>, vector<288x4xbf16>, vector<288x4xbf16> -> vector<288x36xbf16>
    %c0_27 = arith.constant 0 : index
    %c0_28 = arith.constant 0 : index
    %19 = vector.load %arg3[%c0_27, %c0_28] : memref<36x128xbf16, #tpu.memory_space<vmem>>, vector<36x128xbf16>
    %cst = arith.constant dense<0.000000e+00> : vector<288x128xf32>
    %20 = tpu.matmul %18, %19, %cst {dimension_numbers = #tpu.dot_dimension_numbers<[1], [0], [0], [1], [0, 0, 1, 1], [], []>} : vector<288x36xbf16>, vector<36x128xbf16>, vector<288x128xf32> -> vector<288x128xf32>
    %c0_29 = arith.constant 0 : index
    %c0_30 = arith.constant 0 : index
    %21 = vector.load %arg4[%c0_29, %c0_30] : memref<1x128xf32, #tpu.memory_space<vmem>>, vector<1x128xf32>
    %22 = vector.broadcast %21 : vector<1x128xf32> to vector<288x128xf32>
    %23 = arith.mulf %20, %22 : vector<288x128xf32>
    %c0_31 = arith.constant 0 : index
    %c0_32 = arith.constant 0 : index
    %24 = vector.load %arg5[%c0_31, %c0_32] : memref<1x128xf32, #tpu.memory_space<vmem>>, vector<1x128xf32>
    %25 = vector.broadcast %24 : vector<1x128xf32> to vector<288x128xf32>
    %26 = arith.addf %23, %25 : vector<288x128xf32>
    %cst_33 = arith.constant 0.000000e+00 : f32
    %27 = vector.broadcast %cst_33 : f32 to vector<288x128xf32>
    %28 = arith.maximumf %26, %27 : vector<288x128xf32>
    %29 = arith.truncf %28 : vector<288x128xf32> to vector<288x128xbf16>
    %c0_34 = arith.constant 0 : index
    %c0_35 = arith.constant 0 : index
    %c0_36 = arith.constant 0 : index
    %c0_37 = arith.constant 0 : index
    %30 = vector.load %arg6[%c0_34, %c0_35, %c0_36, %c0_37] : memref<1x1x288x128xbf16, #tpu.memory_space<vmem>>, vector<1x1x288x128xbf16>
    %31 = vector.shape_cast %30 : vector<1x1x288x128xbf16> to vector<288x128xbf16>
    %32 = vector.shape_cast %29 : vector<288x128xbf16> to vector<1x1x288x128xbf16>
    tpu.vector_store %arg6[%c0_34, %c0_35, %c0_36, %c0_37], %32 {strides = array<i32>} : memref<1x1x288x128xbf16, #tpu.memory_space<vmem>>, vector<1x1x288x128xbf16>,
    return
  }
  func.func @transform_0(%arg0: i32, %arg1: i32) -> (i32, i32, i32, i32) {
    %c0_i32 = arith.constant 0 : i32
    %c0_i32_0 = arith.constant 0 : i32
    %c0_i32_1 = arith.constant 0 : i32
    return %arg0, %arg1, %c0_i32, %c0_i32_0 : i32, i32, i32, i32
  }
  func.func @transform_1(%arg0: i32, %arg1: i32) -> (i32, i32) {
    %c0_i32 = arith.constant 0 : i32
    %c0_i32_0 = arith.constant 0 : i32
    %c0_i32_1 = arith.constant 0 : i32
    return %c0_i32, %c0_i32_0 : i32, i32
  }
  func.func @transform_2(%arg0: i32, %arg1: i32) -> (i32, i32) {
    %c0_i32 = arith.constant 0 : i32
    %c0_i32_0 = arith.constant 0 : i32
    %c0_i32_1 = arith.constant 0 : i32
    return %c0_i32, %c0_i32_0 : i32, i32
  }
  func.func @transform_3(%arg0: i32, %arg1: i32) -> (i32, i32) {
    %c0_i32 = arith.constant 0 : i32
    %c0_i32_0 = arith.constant 0 : i32
    %c0_i32_1 = arith.constant 0 : i32
    return %c0_i32, %c0_i32_0 : i32, i32
  }
  func.func @transform_4(%arg0: i32, %arg1: i32) -> (i32, i32, i32, i32) {
    %c0_i32 = arith.constant 0 : i32
    %c0_i32_0 = arith.constant 0 : i32
    %c0_i32_1 = arith.constant 0 : i32
    return %arg0, %arg1, %c0_i32, %c0_i32_0 : i32, i32, i32, i32
  }
}

</mosaic_0001>

<llo_original>
// kernel: basic_block_1w4a_forward.1
$region0: #{basic_block_1w4a_forward.1}
  #allocation0 [shape = 'u32[]', space=smem, size = 0x4, offset = 0x4, fixed_abs, tag = 'smem constant byte address 0x4 - core index']
  #allocation1 [shape = 'u32[144,128]{1,0:T(1,128)}', space=vmem, size = 0x12000, scoped, tag = 'internal scratch']
  %s0 = inlined_call_operand.vmem [shape: bf16[2,1,326,4], index: 0, kind: input, shape index: {}]
  %s1 = inlined_call_operand.vmem [shape: bf16[36,128], index: 1, kind: input, shape index: {}]
  %s2 = inlined_call_operand.vmem [shape: f32[1,128], index: 2, kind: input, shape index: {}]
  %s3 = inlined_call_operand.vmem [shape: f32[1,128], index: 3, kind: input, shape index: {}]
  %s4 = inlined_call_operand.vmem [shape: bf16[2,1,288,128], index: 4, kind: output, shape index: {}]
  %s5 = sld [smem:[#allocation0]]
  $region49: #{basic_block_1w4a_forward.1} parent=0
    _
  %s7 = ssub.s32 1, %s5
  %s8 = scalar_select 0, %s7, %s5
  loop: start=0, step=1, limit=4
  $region2: #{basic_block_1w4a_forward.1} parent=0 // loop_pre_header
    _
  $region3: #{basic_block_1w4a_forward.1} parent=0 // loop_header
    %s10 = sphi 0, %s14
    %p11 = scmp.ge.s32.totalorder %s10, 4
    %s17 = sphi 0, %s29
    %s18 = sphi 0, %s25
    %s19 = sphi 0, %s17
    %s20 = sphi 0, %s18
    %s21 = sphi 0, %s19
    %s22 = sphi 0, %s20
    %s34 = sphi 0, %s36
    %s37 = sphi 0, %s34
    %s38 = sphi 0, %s37
    %s54 = sphi 0, %s38
    %s58 = sphi 0, %s58
    %s60 = sphi 0, %s58
    %s61 = sphi 0, %s60
    %s75 = sphi 0, %s61
    %s79 = sphi 0, %s79
    %s81 = sphi 0, %s79
    %s82 = sphi 0, %s81
    %s96 = sphi 0, %s82
    %s100 = sphi 0, %s100
    %s102 = sphi 0, %s100
    %s103 = sphi 0, %s102
    %s117 = sphi 0, %s103
    %s125 = sphi 0, %s127
    %s128 = sphi 0, %s125
    %s129 = sphi 0, %s128
    %s145 = sphi 0, %s129
  $region4: #{basic_block_1w4a_forward.1} parent=0 // loop_header_branch
    %13 = sbr.rel (%p11) target = $region8
  $region5: #{basic_block_1w4a_forward.1} parent=0 // loop_body
    %s15 = ssub.s32 %s10, 1
    %s16 = ssub.s32 %s10, 2
    %s23 = sadd.s32 1, %s18
    %p24 = scmp.ge.s32.totalorder %s23, 1
    %s25 = scalar_select %p24, 0, %s23
    %s26 = sadd.s32 1, %s17
    %s27 = scalar_select %p24, %s26, %s17
    %p28 = scmp.ge.s32.totalorder %s27, 2
    %s29 = scalar_select %p28, 0, %s27
    %s30 = ssub.s32 %s17, %s29
    %s31 = ssub.s32 %s18, %s25
    %s32 = sor.u32 %s30, %s31
    %p33 = scmp.eq.s32.totalorder %s32, 0
    %s35 = sadd.s32 %s34, 1
    %s36 = scalar_select %p33, %s34, %s35
    %p39 = pneg %p33
    %p40 = scmp.eq.s32.totalorder %s10, 1
    %p41 = por %p39, %p40
    %p42 = scmp.ne.s32.totalorder %s34, %s37
    %p43 = scmp.eq.s32.totalorder %s10, 0
    %p44 = por %p42, %p43
    %p45 = scmp.ne.s32.totalorder %s34, %s37
    %p46 = scmp.eq.s32.totalorder %s15, 1
    %p47 = por %p45, %p46
    %p48 = scmp.ne.s32.totalorder %s37, %s38
    %p49 = scmp.eq.s32.totalorder %s15, 0
    %p50 = por %p48, %p49
    %p51 = scmp.ne.s32.totalorder %s37, %s38
    %p52 = scmp.eq.s32.totalorder %s16, 1
    %p53 = por %p51, %p52
    %p55 = scmp.ne.s32.totalorder %s38, %s54
    %p56 = scmp.eq.s32.totalorder %s16, 0
    %p57 = por %p55, %p56
    %s59 = sadd.s32 %s58, 1
    %p62 = scmp.eq.s32.totalorder %s10, 1
    %p63 = scmp.ne.s32.totalorder %s58, %s60
    %p64 = scmp.eq.s32.totalorder %s10, 0
    %p65 = por %p63, %p64
    %p66 = scmp.ne.s32.totalorder %s58, %s60
    %p67 = scmp.eq.s32.totalorder %s15, 1
    %p68 = por %p66, %p67
    %p69 = scmp.ne.s32.totalorder %s60, %s61
    %p70 = scmp.eq.s32.totalorder %s15, 0
    %p71 = por %p69, %p70
    %p72 = scmp.ne.s32.totalorder %s60, %s61
    %p73 = scmp.eq.s32.totalorder %s16, 1
    %p74 = por %p72, %p73
    %p76 = scmp.ne.s32.totalorder %s61, %s75
    %p77 = scmp.eq.s32.totalorder %s16, 0
    %p78 = por %p76, %p77
    %s80 = sadd.s32 %s79, 1
    %p83 = scmp.eq.s32.totalorder %s10, 1
    %p84 = scmp.ne.s32.totalorder %s79, %s81
    %p85 = scmp.eq.s32.totalorder %s10, 0
    %p86 = por %p84, %p85
    %p87 = scmp.ne.s32.totalorder %s79, %s81
    %p88 = scmp.eq.s32.totalorder %s15, 1
    %p89 = por %p87, %p88
    %p90 = scmp.ne.s32.totalorder %s81, %s82
    %p91 = scmp.eq.s32.totalorder %s15, 0
    %p92 = por %p90, %p91
    %p93 = scmp.ne.s32.totalorder %s81, %s82
    %p94 = scmp.eq.s32.totalorder %s16, 1
    %p95 = por %p93, %p94
    %p97 = scmp.ne.s32.totalorder %s82, %s96
    %p98 = scmp.eq.s32.totalorder %s16, 0
    %p99 = por %p97, %p98
    %s101 = sadd.s32 %s100, 1
    %p104 = scmp.eq.s32.totalorder %s10, 1
    %p105 = scmp.ne.s32.totalorder %s100, %s102
    %p106 = scmp.eq.s32.totalorder %s10, 0
    %p107 = por %p105, %p106
    %p108 = scmp.ne.s32.totalorder %s100, %s102
    %p109 = scmp.eq.s32.totalorder %s15, 1
    %p110 = por %p108, %p109
    %p111 = scmp.ne.s32.totalorder %s102, %s103
    %p112 = scmp.eq.s32.totalorder %s15, 0
    %p113 = por %p111, %p112
    %p114 = scmp.ne.s32.totalorder %s102, %s103
    %p115 = scmp.eq.s32.totalorder %s16, 1
    %p116 = por %p114, %p115
    %p118 = scmp.ne.s32.totalorder %s103, %s117
    %p119 = scmp.eq.s32.totalorder %s16, 0
    %p120 = por %p118, %p119
    %s121 = ssub.s32 %s17, %s29
    %s122 = ssub.s32 %s18, %s25
    %s123 = sor.u32 %s121, %s122
    %p124 = scmp.eq.s32.totalorder %s123, 0
    %s126 = sadd.s32 %s125, 1
    %s127 = scalar_select %p124, %s125, %s126
    %p130 = pneg %p124
    %p131 = scmp.eq.s32.totalorder %s10, 1
    %p132 = por %p130, %p131
    %p133 = scmp.ne.s32.totalorder %s125, %s128
    %p134 = scmp.eq.s32.totalorder %s10, 0
    %p135 = por %p133, %p134
    %p136 = scmp.ne.s32.totalorder %s125, %s128
    %p137 = scmp.eq.s32.totalorder %s15, 1
    %p138 = por %p136, %p137
    %p139 = scmp.ne.s32.totalorder %s128, %s129
    %p140 = scmp.eq.s32.totalorder %s15, 0
    %p141 = por %p139, %p140
    %p142 = scmp.ne.s32.totalorder %s128, %s129
    %p143 = scmp.eq.s32.totalorder %s16, 1
    %p144 = por %p142, %p143
    %p146 = scmp.ne.s32.totalorder %s129, %s145
    %p147 = scmp.eq.s32.totalorder %s16, 0
    %p148 = por %p146, %p147
    %p149 = scmp.le.s32.totalorder 1, %s10
    %p150 = scmp.lt.s32.totalorder %s10, 3
    %p151 = pnand %p149, %p150
    %p152 = pneg %p151
    // Predicated region
    $region9: #{basic_block_1w4a_forward.1} parent=5 // pred_check
      _
    $region10: #{basic_block_1w4a_forward.1} parent=5 // pred_check_branch
      %154 = sbr.rel (%p151) target = $region12
    $region11: #{basic_block_1w4a_forward.1} parent=5 // pred_region
      %s155 = ssub.s32 %s10, 1
      // Predicated region
      $region13: #{basic_block_1w4a_forward.1} parent=11 // pred_check
        %p156 = pneg %p71
      $region14: #{basic_block_1w4a_forward.1} parent=11 // pred_check_branch
        %158 = sbr.rel (%p156) target = $region16
      $region15: #{basic_block_1w4a_forward.1} parent=11 // pred_region
        _
      $region16: #{basic_block_1w4a_forward.1} parent=11 // pred_fallthru
        _
      // Predicated region
      $region17: #{basic_block_1w4a_forward.1} parent=11 // pred_check
        %p159 = pneg %p92
      $region18: #{basic_block_1w4a_forward.1} parent=11 // pred_check_branch
        %161 = sbr.rel (%p159) target = $region20
      $region19: #{basic_block_1w4a_forward.1} parent=11 // pred_region
        _
      $region20: #{basic_block_1w4a_forward.1} parent=11 // pred_fallthru
        _
      // Predicated region
      $region21: #{basic_block_1w4a_forward.1} parent=11 // pred_check
        %p162 = pneg %p113
      $region22: #{basic_block_1w4a_forward.1} parent=11 // pred_check_branch
        %164 = sbr.rel (%p162) target = $region24
      $region23: #{basic_block_1w4a_forward.1} parent=11 // pred_region
        _
      $region24: #{basic_block_1w4a_forward.1} parent=11 // pred_fallthru
        _
    $region12: #{basic_block_1w4a_forward.1} parent=5 // pred_fallthru
      _
    %p165 = scmp.lt.s32.totalorder %s10, 2
    // Predicated region
    $region25: #{basic_block_1w4a_forward.1} parent=5 // pred_check
      %p166 = pneg %p165
    $region26: #{basic_block_1w4a_forward.1} parent=5 // pred_check_branch
      %168 = sbr.rel (%p166) target = $region28
    $region27: #{basic_block_1w4a_forward.1} parent=5 // pred_region
      // Predicated region
      $region29: #{basic_block_1w4a_forward.1} parent=27 // pred_check
        %p169 = pneg %p44
      $region30: #{basic_block_1w4a_forward.1} parent=27 // pred_check_branch
        %171 = sbr.rel (%p169) target = $region32
      $region31: #{basic_block_1w4a_forward.1} parent=27 // pred_region
        %p172 = scmp.lt.s32.totalorder %s17, 1
        %s173 = scalar_select %p172, %s17, 1
        %p174 = scmp.lt.s32.totalorder %s18, 0
        %s175 = scalar_select %p174, %s18, 0
        %s176 = smul.addr %s175, 41
        %s177 = smul.addr %s173, 41
        %s178 = sadd.s32 %s176, %s177
        %s179 = smul.addr %s178, 4
        %s180 = scalar_lea.vmem %s0, %s179
      $region32: #{basic_block_1w4a_forward.1} parent=27 // pred_fallthru
        _
    $region28: #{basic_block_1w4a_forward.1} parent=5 // pred_fallthru
      _
    %p181 = scmp.le.s32.totalorder 1, %s10
    %p182 = scmp.lt.s32.totalorder %s10, 3
    %p183 = pnand %p181, %p182
    %p184 = pneg %p183
    // Predicated region
    $region33: #{basic_block_1w4a_forward.1} parent=5 // pred_check
      _
    $region34: #{basic_block_1w4a_forward.1} parent=5 // pred_check_branch
      %186 = sbr.rel (%p183) target = $region36
    $region35: #{basic_block_1w4a_forward.1} parent=5 // pred_region
      %s187 = ssub.s32 %s10, 1
      %p188 = scmp.lt.s32.totalorder %s19, 1
      %s189 = scalar_select %p188, %s19, 1
      %p190 = scmp.lt.s32.totalorder %s20, 0
      %s191 = scalar_select %p190, %s20, 0
      %s192 = smul.addr %s191, 41
      %s193 = smul.addr %s189, 41
      %s194 = sadd.s32 %s192, %s193
      %s195 = smul.addr %s194, 4
      %s196 = scalar_lea.vmem %s0, %s195
      %p197 = pneg %p50
      %p198 = pneg %p47
      %p199 = pneg %p71
      %p200 = pneg %p68
      %p201 = pneg %p92
      %p202 = pneg %p89
      %p203 = pneg %p113
      %p204 = pneg %p110
      %p205 = pneg %p141
      %p206 = pneg %p138
      %p207 = scmp.lt.s32.totalorder %s19, 1
      %s208 = scalar_select %p207, %s19, 1
      %p209 = scmp.lt.s32.totalorder %s20, 0
      %s210 = scalar_select %p209, %s20, 0
      %s211 = smul.addr %s210, 36
      %s212 = smul.addr %s208, 36
      %s213 = sadd.s32 %s211, %s212
      %s214 = smul.addr %s213, 4
      %s215 = scalar_lea.vmem %s4, %s214
      %p216 = scmp.lt.s32.totalorder %s19, 1
      %s217 = scalar_select %p216, %s19, 1
      %p218 = scmp.lt.s32.totalorder %s20, 0
      %s219 = scalar_select %p218, %s20, 0
      %s220 = smul.addr %s219, 41
      %s221 = smul.addr %s217, 41
      %s222 = sadd.s32 %s220, %s221
      %s223 = smul.addr %s222, 4
      %s224 = scalar_lea.vmem %s0, %s223
      %p225 = scmp.lt.s32.totalorder %s19, 1
      %s226 = scalar_select %p225, %s19, 1
      %p227 = scmp.lt.s32.totalorder %s20, 0
      %s228 = scalar_select %p227, %s20, 0
      %s229 = smul.addr %s228, 36
      %s230 = smul.addr %s226, 36
      %s231 = sadd.s32 %s229, %s230
      %s232 = smul.addr %s231, 4
      %s233 = scalar_lea.vmem %s4, %s232
      %v235 = vld [vmem:[%s224] sm:$0xf]
      %v236 = vld [vmem:[%s224 + $0x4] sm:$0xf]
      %v237 = vld [vmem:[%s224 + $0x8] sm:$0xf]
      %v238 = vld [vmem:[%s224 + $0xc] sm:$0xf]
      %v239 = vld [vmem:[%s224 + $0x10] sm:$0xf]
      %v240 = vld [vmem:[%s224 + $0x14] sm:$0xf]
      %v241 = vld [vmem:[%s224 + $0x18] sm:$0xf]
      %v242 = vld [vmem:[%s224 + $0x1c] sm:$0xf]
      %v243 = vld [vmem:[%s224 + $0x20] sm:$0xf]
      %v244 = vld [vmem:[%s224 + $0x24] sm:$0xf]
      %v245 = vld [vmem:[%s224 + $0x28] sm:$0xf]
      %v246 = vld [vmem:[%s224 + $0x2c] sm:$0xf]
      %v247 = vld [vmem:[%s224 + $0x30] sm:$0xf]
      %v248 = vld [vmem:[%s224 + $0x34] sm:$0xf]
      %v249 = vld [vmem:[%s224 + $0x38] sm:$0xf]
      %v250 = vld [vmem:[%s224 + $0x3c] sm:$0xf]
      %v251 = vld [vmem:[%s224 + $0x40] sm:$0xf]
      %v252 = vld [vmem:[%s224 + $0x44] sm:$0xf]
      %v253 = vld [vmem:[%s224 + $0x48] sm:$0xf]
      %v254 = vld [vmem:[%s224 + $0x4c] sm:$0xf]
      %v255 = vld [vmem:[%s224 + $0x50] sm:$0xf]
      %v256 = vld [vmem:[%s224 + $0x54] sm:$0xf]
      %v257 = vld [vmem:[%s224 + $0x58] sm:$0xf]
      %v258 = vld [vmem:[%s224 + $0x5c] sm:$0xf]
      %v259 = vld [vmem:[%s224 + $0x60] sm:$0xf]
      %v260 = vld [vmem:[%s224 + $0x64] sm:$0xf]
      %v261 = vld [vmem:[%s224 + $0x68] sm:$0xf]
      %v262 = vld [vmem:[%s224 + $0x6c] sm:$0xf]
      %v263 = vld [vmem:[%s224 + $0x70] sm:$0xf]
      %v264 = vld [vmem:[%s224 + $0x74] sm:$0xf]
      %v265 = vld [vmem:[%s224 + $0x78] sm:$0xf]
      %v266 = vld [vmem:[%s224 + $0x7c] sm:$0xf]
      %v267 = vld [vmem:[%s224 + $0x80] sm:$0xf]
      %v268 = vld [vmem:[%s224 + $0x84] sm:$0xf]
      %v269 = vld [vmem:[%s224 + $0x88] sm:$0xf]
      %v270 = vld [vmem:[%s224 + $0x8c] sm:$0xf]
      %v271 = vld [vmem:[%s224 + $0x90] sm:$0x1]
      %v272 = vld [vmem:[%s224] sm:$0xe]
      %v273 = vld [vmem:[%s224 + $0x8] sm:$0xe]
      %v274 = vld [vmem:[%s224 + $0x90] sm:$0xf]
      %v275 = vld [vmem:[%s224 + $0x94] sm:$0xf]
      %v276 = vld [vmem:[%s224 + $0x98] sm:$0x1]
      %v277 = vld [vmem:[%s224 + $0x98] sm:$0x3]
      %v278 = vld [vmem:[%s224 + $0x8] sm:$0xc]
      %v279 = vld [vmem:[%s224 + $0x10] sm:$0xc]
      %v280 = vld [vmem:[%s224 + $0x98] sm:$0xf]
      %v281 = vld [vmem:[%s224 + $0x9c] sm:$0xf]
      %v282 = vld [vmem:[%s224 + $0xa0] sm:$0x3]
      %v283 = vld [vmem:[%s224 + $0xa0] sm:$0x7]
      %v284 = vld [vmem:[%s224 + $0x10] sm:$0x8]
      %v321 = vunpack.c.l.b16 %v235
      %v322 = vunpack.c.l.b16 %v236
      %v323 = vunpack.c.l.b16 %v237
      %v324 = vunpack.c.l.b16 %v238
      %v325 = vunpack.c.l.b16 %v239
      %v326 = vunpack.c.l.b16 %v240
      %v327 = vunpack.c.l.b16 %v241
      %v328 = vunpack.c.l.b16 %v242
      %v329 = vunpack.c.l.b16 %v243
      %v330 = vunpack.c.l.b16 %v244
      %v331 = vunpack.c.l.b16 %v245
      %v332 = vunpack.c.l.b16 %v246
      %v333 = vunpack.c.l.b16 %v247
      %v334 = vunpack.c.l.b16 %v248
      %v335 = vunpack.c.l.b16 %v249
      %v336 = vunpack.c.l.b16 %v250
      %v337 = vunpack.c.l.b16 %v251
      %v338 = vunpack.c.l.b16 %v252
      %v339 = vunpack.c.l.b16 %v253
      %v340 = vunpack.c.l.b16 %v254
      %v341 = vunpack.c.l.b16 %v255
      %v342 = vunpack.c.l.b16 %v256
      %v343 = vunpack.c.l.b16 %v257
      %v344 = vunpack.c.l.b16 %v258
      %v345 = vunpack.c.l.b16 %v259
      %v346 = vunpack.c.l.b16 %v260
      %v347 = vunpack.c.l.b16 %v261
      %v348 = vunpack.c.l.b16 %v262
      %v349 = vunpack.c.l.b16 %v263
      %v350 = vunpack.c.l.b16 %v264
      %v351 = vunpack.c.l.b16 %v265
      %v352 = vunpack.c.l.b16 %v266
      %v353 = vunpack.c.l.b16 %v267
      %v354 = vunpack.c.l.b16 %v268
      %v355 = vunpack.c.l.b16 %v269
      %v356 = vunpack.c.l.b16 %v270
      %v357 = vpack.c.b16 %v322, %v321
      %v358 = vpack.c.b16 %v324, %v323
      %v359 = vpack.c.b16 %v326, %v325
      %v360 = vpack.c.b16 %v328, %v327
      %v361 = vpack.c.b16 %v330, %v329
      %v362 = vpack.c.b16 %v332, %v331
      %v363 = vpack.c.b16 %v334, %v333
      %v364 = vpack.c.b16 %v336, %v335
      %v365 = vpack.c.b16 %v338, %v337
      %v366 = vpack.c.b16 %v340, %v339
      %v367 = vpack.c.b16 %v342, %v341
      %v368 = vpack.c.b16 %v344, %v343
      %v369 = vpack.c.b16 %v346, %v345
      %v370 = vpack.c.b16 %v348, %v347
      %v371 = vpack.c.b16 %v350, %v349
      %v372 = vpack.c.b16 %v352, %v351
      %v373 = vpack.c.b16 %v354, %v353
      %v374 = vpack.c.b16 %v356, %v355
      %v376 = vunpack.c.l.b16 %v271
      %v377 = vpack.c.b16 %v376, %v376
      %vm378 = vsmask.f32 7424
      %v380 = vshrl.u32 %v357, 16
      %v382 = vshll.u32 %v357, 16
      %v384 = vrot.slane %v382, 1
      %v385 = vor.u32 %v380, %v384
      %v387 = vshll.u32 %v358, 16
      %v389 = vrot.slane %v387, 1
      %v390 = vsel %vm378, %v385, %v389
      %v391 = vshrl.u32 %v358, 16
      %v393 = vor.u32 %v391, %v389
      %v395 = vshll.u32 %v359, 16
      %v397 = vrot.slane %v395, 1
      %v398 = vsel %vm378, %v393, %v397
      %v399 = vshrl.u32 %v359, 16
      %v401 = vor.u32 %v399, %v397
      %v403 = vshll.u32 %v360, 16
      %v405 = vrot.slane %v403, 1
      %v406 = vsel %vm378, %v401, %v405
      %v407 = vshrl.u32 %v360, 16
      %v409 = vor.u32 %v407, %v405
      %v411 = vshll.u32 %v361, 16
      %v413 = vrot.slane %v411, 1
      %v414 = vsel %vm378, %v409, %v413
      %v415 = vshrl.u32 %v361, 16
      %v417 = vor.u32 %v415, %v413
      %v419 = vshll.u32 %v362, 16
      %v421 = vrot.slane %v419, 1
      %v422 = vsel %vm378, %v417, %v421
      %v423 = vshrl.u32 %v362, 16
      %v425 = vor.u32 %v423, %v421
      %v427 = vshll.u32 %v363, 16
      %v429 = vrot.slane %v427, 1
      %v430 = vsel %vm378, %v425, %v429
      %v431 = vshrl.u32 %v363, 16
      %v433 = vor.u32 %v431, %v429
      %v435 = vshll.u32 %v364, 16
      %v437 = vrot.slane %v435, 1
      %v438 = vsel %vm378, %v433, %v437
      %v439 = vshrl.u32 %v364, 16
      %v441 = vor.u32 %v439, %v437
      %v443 = vshll.u32 %v365, 16
      %v445 = vrot.slane %v443, 1
      %v446 = vsel %vm378, %v441, %v445
      %v447 = vshrl.u32 %v365, 16
      %v449 = vor.u32 %v447, %v445
      %v451 = vshll.u32 %v366, 16
      %v453 = vrot.slane %v451, 1
      %v454 = vsel %vm378, %v449, %v453
      %v455 = vshrl.u32 %v366, 16
      %v457 = vor.u32 %v455, %v453
      %v459 = vshll.u32 %v367, 16
      %v461 = vrot.slane %v459, 1
      %v462 = vsel %vm378, %v457, %v461
      %v463 = vshrl.u32 %v367, 16
      %v465 = vor.u32 %v463, %v461
      %v467 = vshll.u32 %v368, 16
      %v469 = vrot.slane %v467, 1
      %v470 = vsel %vm378, %v465, %v469
      %v471 = vshrl.u32 %v368, 16
      %v473 = vor.u32 %v471, %v469
      %v475 = vshll.u32 %v369, 16
      %v477 = vrot.slane %v475, 1
      %v478 = vsel %vm378, %v473, %v477
      %v479 = vshrl.u32 %v369, 16
      %v481 = vor.u32 %v479, %v477
      %v483 = vshll.u32 %v370, 16
      %v485 = vrot.slane %v483, 1
      %v486 = vsel %vm378, %v481, %v485
      %v487 = vshrl.u32 %v370, 16
      %v489 = vor.u32 %v487, %v485
      %v491 = vshll.u32 %v371, 16
      %v493 = vrot.slane %v491, 1
      %v494 = vsel %vm378, %v489, %v493
      %v495 = vshrl.u32 %v371, 16
      %v497 = vor.u32 %v495, %v493
      %v499 = vshll.u32 %v372, 16
      %v501 = vrot.slane %v499, 1
      %v502 = vsel %vm378, %v497, %v501
      %v503 = vshrl.u32 %v372, 16
      %v505 = vor.u32 %v503, %v501
      %v507 = vshll.u32 %v373, 16
      %v509 = vrot.slane %v507, 1
      %v510 = vsel %vm378, %v505, %v509
      %v511 = vshrl.u32 %v373, 16
      %v513 = vor.u32 %v511, %v509
      %v515 = vshll.u32 %v374, 16
      %v517 = vrot.slane %v515, 1
      %v518 = vsel %vm378, %v513, %v517
      %v519 = vshrl.u32 %v374, 16
      %v521 = vor.u32 %v519, %v517
      %v523 = vshll.u32 %v377, 16
      %v525 = vrot.slane %v523, 1
      %v526 = vsel %vm378, %v521, %v525
      %527 = vrot.lane.b32.xlu0 %v390, 4
      %v528 = vpop.permute.xlu0 %527
      %529 = vrot.lane.b32.xlu0 %v398, 4
      %v530 = vpop.permute.xlu0 %529
      %531 = vrot.lane.b32.xlu0 %v406, 4
      %v532 = vpop.permute.xlu0 %531
      %533 = vrot.lane.b32.xlu0 %v414, 4
      %v534 = vpop.permute.xlu0 %533
      %535 = vrot.lane.b32.xlu0 %v422, 4
      %v536 = vpop.permute.xlu0 %535
      %537 = vrot.lane.b32.xlu0 %v430, 4
      %v538 = vpop.permute.xlu0 %537
      %539 = vrot.lane.b32.xlu0 %v438, 4
      %v540 = vpop.permute.xlu0 %539
      %541 = vrot.lane.b32.xlu0 %v446, 4
      %v542 = vpop.permute.xlu0 %541
      %543 = vrot.lane.b32.xlu0 %v454, 4
      %v544 = vpop.permute.xlu0 %543
      %545 = vrot.lane.b32.xlu0 %v462, 4
      %v546 = vpop.permute.xlu0 %545
      %547 = vrot.lane.b32.xlu0 %v470, 4
      %v548 = vpop.permute.xlu0 %547
      %549 = vrot.lane.b32.xlu0 %v478, 4
      %v550 = vpop.permute.xlu0 %549
      %551 = vrot.lane.b32.xlu0 %v486, 4
      %v552 = vpop.permute.xlu0 %551
      %553 = vrot.lane.b32.xlu0 %v494, 4
      %v554 = vpop.permute.xlu0 %553
      %555 = vrot.lane.b32.xlu0 %v502, 4
      %v556 = vpop.permute.xlu0 %555
      %557 = vrot.lane.b32.xlu0 %v510, 4
      %v558 = vpop.permute.xlu0 %557
      %559 = vrot.lane.b32.xlu0 %v518, 4
      %v560 = vpop.permute.xlu0 %559
      %561 = vrot.lane.b32.xlu0 %v526, 4
      %v562 = vpop.permute.xlu0 %561
      %v564 = vunpack.c.l.b16 %v272
      %v565 = vpack.c.b16 %v322, %v564
      %vm566 = vcmask 1046528
      %v567 = vrot.slane %v565, 1
      %v568 = vrot.slane %v358, 1
      %v569 = vsel %vm566, %v567, %v568
      %v570 = vrot.slane %v359, 1
      %v571 = vsel %vm566, %v568, %v570
      %v572 = vrot.slane %v360, 1
      %v573 = vsel %vm566, %v570, %v572
      %v574 = vrot.slane %v361, 1
      %v575 = vsel %vm566, %v572, %v574
      %v576 = vrot.slane %v362, 1
      %v577 = vsel %vm566, %v574, %v576
      %v578 = vrot.slane %v363, 1
      %v579 = vsel %vm566, %v576, %v578
      %v580 = vrot.slane %v364, 1
      %v581 = vsel %vm566, %v578, %v580
      %v582 = vrot.slane %v365, 1
      %v583 = vsel %vm566, %v580, %v582
      %v584 = vrot.slane %v366, 1
      %v585 = vsel %vm566, %v582, %v584
      %v586 = vrot.slane %v367, 1
      %v587 = vsel %vm566, %v584, %v586
      %v588 = vrot.slane %v368, 1
      %v589 = vsel %vm566, %v586, %v588
      %v590 = vrot.slane %v369, 1
      %v591 = vsel %vm566, %v588, %v590
      %v592 = vrot.slane %v370, 1
      %v593 = vsel %vm566, %v590, %v592
      %v594 = vrot.slane %v371, 1
      %v595 = vsel %vm566, %v592, %v594
      %v596 = vrot.slane %v372, 1
      %v597 = vsel %vm566, %v594, %v596
      %v598 = vrot.slane %v373, 1
      %v599 = vsel %vm566, %v596, %v598
      %v600 = vrot.slane %v374, 1
      %v601 = vsel %vm566, %v598, %v600
      %v602 = vrot.slane %v377, 1
      %v603 = vsel %vm566, %v600, %v602
      %604 = vrot.lane.b32.xlu0 %v569, 8
      %v605 = vpop.permute.xlu0 %604
      %606 = vrot.lane.b32.xlu0 %v571, 8
      %v607 = vpop.permute.xlu0 %606
      %608 = vrot.lane.b32.xlu0 %v573, 8
      %v609 = vpop.permute.xlu0 %608
      %610 = vrot.lane.b32.xlu0 %v575, 8
      %v611 = vpop.permute.xlu0 %610
      %612 = vrot.lane.b32.xlu0 %v577, 8
      %v613 = vpop.permute.xlu0 %612
      %614 = vrot.lane.b32.xlu0 %v579, 8
      %v615 = vpop.permute.xlu0 %614
      %616 = vrot.lane.b32.xlu0 %v581, 8
      %v617 = vpop.permute.xlu0 %616
      %618 = vrot.lane.b32.xlu0 %v583, 8
      %v619 = vpop.permute.xlu0 %618
      %620 = vrot.lane.b32.xlu0 %v585, 8
      %v621 = vpop.permute.xlu0 %620
      %622 = vrot.lane.b32.xlu0 %v587, 8
      %v623 = vpop.permute.xlu0 %622
      %624 = vrot.lane.b32.xlu0 %v589, 8
      %v625 = vpop.permute.xlu0 %624
      %626 = vrot.lane.b32.xlu0 %v591, 8
      %v627 = vpop.permute.xlu0 %626
      %628 = vrot.lane.b32.xlu0 %v593, 8
      %v629 = vpop.permute.xlu0 %628
      %630 = vrot.lane.b32.xlu0 %v595, 8
      %v631 = vpop.permute.xlu0 %630
      %632 = vrot.lane.b32.xlu0 %v597, 8
      %v633 = vpop.permute.xlu0 %632
      %634 = vrot.lane.b32.xlu0 %v599, 8
      %v635 = vpop.permute.xlu0 %634
      %636 = vrot.lane.b32.xlu0 %v601, 8
      %v637 = vpop.permute.xlu0 %636
      %638 = vrot.lane.b32.xlu0 %v603, 8
      %v639 = vpop.permute.xlu0 %638
      %v644 = vunpack.c.l.b16 %v273
      %v645 = vunpack.c.l.b16 %v274
      %v646 = vunpack.c.l.b16 %v275
      %v647 = vunpack.c.l.b16 %v276
      %v648 = vpack.c.b16 %v324, %v644
      %v649 = vpack.c.b16 %v646, %v645
      %v650 = vpack.c.b16 %v647, %v647
      %v651 = vrot.slane %v648, 1
      %v652 = vsel %vm566, %v651, %v570
      %v653 = vrot.slane %v649, 1
      %v654 = vsel %vm566, %v600, %v653
      %v655 = vrot.slane %v650, 1
      %v656 = vsel %vm566, %v653, %v655
      %657 = vrot.lane.b32.xlu0 %v652, 12
      %v658 = vpop.permute.xlu0 %657
      %659 = vrot.lane.b32.xlu0 %v573, 12
      %v660 = vpop.permute.xlu0 %659
      %661 = vrot.lane.b32.xlu0 %v575, 12
      %v662 = vpop.permute.xlu0 %661
      %663 = vrot.lane.b32.xlu0 %v577, 12
      %v664 = vpop.permute.xlu0 %663
      %665 = vrot.lane.b32.xlu0 %v579, 12
      %v666 = vpop.permute.xlu0 %665
      %667 = vrot.lane.b32.xlu0 %v581, 12
      %v668 = vpop.permute.xlu0 %667
      %669 = vrot.lane.b32.xlu0 %v583, 12
      %v670 = vpop.permute.xlu0 %669
      %671 = vrot.lane.b32.xlu0 %v585, 12
      %v672 = vpop.permute.xlu0 %671
      %673 = vrot.lane.b32.xlu0 %v587, 12
      %v674 = vpop.permute.xlu0 %673
      %675 = vrot.lane.b32.xlu0 %v589, 12
      %v676 = vpop.permute.xlu0 %675
      %677 = vrot.lane.b32.xlu0 %v591, 12
      %v678 = vpop.permute.xlu0 %677
      %679 = vrot.lane.b32.xlu0 %v593, 12
      %v680 = vpop.permute.xlu0 %679
      %681 = vrot.lane.b32.xlu0 %v595, 12
      %v682 = vpop.permute.xlu0 %681
      %683 = vrot.lane.b32.xlu0 %v597, 12
      %v684 = vpop.permute.xlu0 %683
      %685 = vrot.lane.b32.xlu0 %v599, 12
      %v686 = vpop.permute.xlu0 %685
      %687 = vrot.lane.b32.xlu0 %v601, 12
      %v688 = vpop.permute.xlu0 %687
      %689 = vrot.lane.b32.xlu0 %v654, 12
      %v690 = vpop.permute.xlu0 %689
      %691 = vrot.lane.b32.xlu0 %v656, 12
      %v692 = vpop.permute.xlu0 %691
      %v694 = vunpack.c.l.b16 %v277
      %v695 = vpack.c.b16 %v694, %v694
      %vm696 = vsmask.f32 6400
      %v698 = vshrl.u32 %v648, 16
      %v700 = vrot.slane %v698, 1
      %v701 = vshll.u32 %v648, 16
      %v703 = vrot.slane %v701, 2
      %v704 = vor.u32 %v700, %v703
      %v705 = vrot.slane %v399, 1
      %v706 = vrot.slane %v395, 2
      %v707 = vor.u32 %v705, %v706
      %v708 = vsel %vm696, %v704, %v707
      %v709 = vrot.slane %v407, 1
      %v710 = vrot.slane %v403, 2
      %v711 = vor.u32 %v709, %v710
      %v712 = vsel %vm696, %v707, %v711
      %v713 = vrot.slane %v415, 1
      %v714 = vrot.slane %v411, 2
      %v715 = vor.u32 %v713, %v714
      %v716 = vsel %vm696, %v711, %v715
      %v717 = vrot.slane %v423, 1
      %v718 = vrot.slane %v419, 2
      %v719 = vor.u32 %v717, %v718
      %v720 = vsel %vm696, %v715, %v719
      %v721 = vrot.slane %v431, 1
      %v722 = vrot.slane %v427, 2
      %v723 = vor.u32 %v721, %v722
      %v724 = vsel %vm696, %v719, %v723
      %v725 = vrot.slane %v439, 1
      %v726 = vrot.slane %v435, 2
      %v727 = vor.u32 %v725, %v726
      %v728 = vsel %vm696, %v723, %v727
      %v729 = vrot.slane %v447, 1
      %v730 = vrot.slane %v443, 2
      %v731 = vor.u32 %v729, %v730
      %v732 = vsel %vm696, %v727, %v731
      %v733 = vrot.slane %v455, 1
      %v734 = vrot.slane %v451, 2
      %v735 = vor.u32 %v733, %v734
      %v736 = vsel %vm696, %v731, %v735
      %v737 = vrot.slane %v463, 1
      %v738 = vrot.slane %v459, 2
      %v739 = vor.u32 %v737, %v738
      %v740 = vsel %vm696, %v735, %v739
      %v741 = vrot.slane %v471, 1
      %v742 = vrot.slane %v467, 2
      %v743 = vor.u32 %v741, %v742
      %v744 = vsel %vm696, %v739, %v743
      %v745 = vrot.slane %v479, 1
      %v746 = vrot.slane %v475, 2
      %v747 = vor.u32 %v745, %v746
      %v748 = vsel %vm696, %v743, %v747
      %v749 = vrot.slane %v487, 1
      %v750 = vrot.slane %v483, 2
      %v751 = vor.u32 %v749, %v750
      %v752 = vsel %vm696, %v747, %v751
      %v753 = vrot.slane %v495, 1
      %v754 = vrot.slane %v491, 2
      %v755 = vor.u32 %v753, %v754
      %v756 = vsel %vm696, %v751, %v755
      %v757 = vrot.slane %v503, 1
      %v758 = vrot.slane %v499, 2
      %v759 = vor.u32 %v757, %v758
      %v760 = vsel %vm696, %v755, %v759
      %v761 = vrot.slane %v511, 1
      %v762 = vrot.slane %v507, 2
      %v763 = vor.u32 %v761, %v762
      %v764 = vsel %vm696, %v759, %v763
      %v765 = vrot.slane %v519, 1
      %v766 = vrot.slane %v515, 2
      %v767 = vor.u32 %v765, %v766
      %v768 = vsel %vm696, %v763, %v767
      %v770 = vshrl.u32 %v649, 16
      %v772 = vrot.slane %v770, 1
      %v773 = vshll.u32 %v649, 16
      %v775 = vrot.slane %v773, 2
      %v776 = vor.u32 %v772, %v775
      %v777 = vsel %vm696, %v767, %v776
      %v779 = vshrl.u32 %v695, 16
      %v781 = vrot.slane %v779, 1
      %v782 = vshll.u32 %v695, 16
      %v784 = vrot.slane %v782, 2
      %v785 = vor.u32 %v781, %v784
      %v786 = vsel %vm696, %v776, %v785
      %787 = vrot.lane.b32.xlu0 %v708, 16
      %v788 = vpop.permute.xlu0 %787
      %789 = vrot.lane.b32.xlu0 %v712, 16
      %v790 = vpop.permute.xlu0 %789
      %791 = vrot.lane.b32.xlu0 %v716, 16
      %v792 = vpop.permute.xlu0 %791
      %793 = vrot.lane.b32.xlu0 %v720, 16
      %v794 = vpop.permute.xlu0 %793
      %795 = vrot.lane.b32.xlu0 %v724, 16
      %v796 = vpop.permute.xlu0 %795
      %797 = vrot.lane.b32.xlu0 %v728, 16
      %v798 = vpop.permute.xlu0 %797
      %799 = vrot.lane.b32.xlu0 %v732, 16
      %v800 = vpop.permute.xlu0 %799
      %801 = vrot.lane.b32.xlu0 %v736, 16
      %v802 = vpop.permute.xlu0 %801
      %803 = vrot.lane.b32.xlu0 %v740, 16
      %v804 = vpop.permute.xlu0 %803
      %805 = vrot.lane.b32.xlu0 %v744, 16
      %v806 = vpop.permute.xlu0 %805
      %807 = vrot.lane.b32.xlu0 %v748, 16
      %v808 = vpop.permute.xlu0 %807
      %809 = vrot.lane.b32.xlu0 %v752, 16
      %v810 = vpop.permute.xlu0 %809
      %811 = vrot.lane.b32.xlu0 %v756, 16
      %v812 = vpop.permute.xlu0 %811
      %813 = vrot.lane.b32.xlu0 %v760, 16
      %v814 = vpop.permute.xlu0 %813
      %815 = vrot.lane.b32.xlu0 %v764, 16
      %v816 = vpop.permute.xlu0 %815
      %817 = vrot.lane.b32.xlu0 %v768, 16
      %v818 = vpop.permute.xlu0 %817
      %819 = vrot.lane.b32.xlu0 %v777, 16
      %v820 = vpop.permute.xlu0 %819
      %821 = vrot.lane.b32.xlu0 %v786, 16
      %v822 = vpop.permute.xlu0 %821
      %v824 = vunpack.c.l.b16 %v278
      %v825 = vpack.c.b16 %v324, %v824
      %vm826 = vcmask 1045504
      %v827 = vrot.slane %v825, 2
      %v828 = vrot.slane %v359, 2
      %v829 = vsel %vm826, %v827, %v828
      %v830 = vrot.slane %v360, 2
      %v831 = vsel %vm826, %v828, %v830
      %v832 = vrot.slane %v361, 2
      %v833 = vsel %vm826, %v830, %v832
      %v834 = vrot.slane %v362, 2
      %v835 = vsel %vm826, %v832, %v834
      %v836 = vrot.slane %v363, 2
      %v837 = vsel %vm826, %v834, %v836
      %v838 = vrot.slane %v364, 2
      %v839 = vsel %vm826, %v836, %v838
      %v840 = vrot.slane %v365, 2
      %v841 = vsel %vm826, %v838, %v840
      %v842 = vrot.slane %v366, 2
      %v843 = vsel %vm826, %v840, %v842
      %v844 = vrot.slane %v367, 2
      %v845 = vsel %vm826, %v842, %v844
      %v846 = vrot.slane %v368, 2
      %v847 = vsel %vm826, %v844, %v846
      %v848 = vrot.slane %v369, 2
      %v849 = vsel %vm826, %v846, %v848
      %v850 = vrot.slane %v370, 2
      %v851 = vsel %vm826, %v848, %v850
      %v852 = vrot.slane %v371, 2
      %v853 = vsel %vm826, %v850, %v852
      %v854 = vrot.slane %v372, 2
      %v855 = vsel %vm826, %v852, %v854
      %v856 = vrot.slane %v373, 2
      %v857 = vsel %vm826, %v854, %v856
      %v858 = vrot.slane %v374, 2
      %v859 = vsel %vm826, %v856, %v858
      %v860 = vrot.slane %v649, 2
      %v861 = vsel %vm826, %v858, %v860
      %v862 = vrot.slane %v695, 2
      %v863 = vsel %vm826, %v860, %v862
      %864 = vrot.lane.b32.xlu0 %v829, 20
      %v865 = vpop.permute.xlu0 %864
      %866 = vrot.lane.b32.xlu0 %v831, 20
      %v867 = vpop.permute.xlu0 %866
      %868 = vrot.lane.b32.xlu0 %v833, 20
      %v869 = vpop.permute.xlu0 %868
      %870 = vrot.lane.b32.xlu0 %v835, 20
      %v871 = vpop.permute.xlu0 %870
      %872 = vrot.lane.b32.xlu0 %v837, 20
      %v873 = vpop.permute.xlu0 %872
      %874 = vrot.lane.b32.xlu0 %v839, 20
      %v875 = vpop.permute.xlu0 %874
      %876 = vrot.lane.b32.xlu0 %v841, 20
      %v877 = vpop.permute.xlu0 %876
      %878 = vrot.lane.b32.xlu0 %v843, 20
      %v879 = vpop.permute.xlu0 %878
      %880 = vrot.lane.b32.xlu0 %v845, 20
      %v881 = vpop.permute.xlu0 %880
      %882 = vrot.lane.b32.xlu0 %v847, 20
      %v883 = vpop.permute.xlu0 %882
      %884 = vrot.lane.b32.xlu0 %v849, 20
      %v885 = vpop.permute.xlu0 %884
      %886 = vrot.lane.b32.xlu0 %v851, 20
      %v887 = vpop.permute.xlu0 %886
      %888 = vrot.lane.b32.xlu0 %v853, 20
      %v889 = vpop.permute.xlu0 %888
      %890 = vrot.lane.b32.xlu0 %v855, 20
      %v891 = vpop.permute.xlu0 %890
      %892 = vrot.lane.b32.xlu0 %v857, 20
      %v893 = vpop.permute.xlu0 %892
      %894 = vrot.lane.b32.xlu0 %v859, 20
      %v895 = vpop.permute.xlu0 %894
      %896 = vrot.lane.b32.xlu0 %v861, 20
      %v897 = vpop.permute.xlu0 %896
      %898 = vrot.lane.b32.xlu0 %v863, 20
      %v899 = vpop.permute.xlu0 %898
      %v904 = vunpack.c.l.b16 %v279
      %v905 = vunpack.c.l.b16 %v280
      %v906 = vunpack.c.l.b16 %v281
      %v907 = vunpack.c.l.b16 %v282
      %v908 = vpack.c.b16 %v326, %v904
      %v909 = vpack.c.b16 %v906, %v905
      %v910 = vpack.c.b16 %v907, %v907
      %v911 = vrot.slane %v908, 2
      %v912 = vsel %vm826, %v911, %v830
      %v913 = vrot.slane %v909, 2
      %v914 = vsel %vm826, %v860, %v913
      %v915 = vrot.slane %v910, 2
      %v916 = vsel %vm826, %v913, %v915
      %917 = vrot.lane.b32.xlu0 %v912, 24
      %v918 = vpop.permute.xlu0 %917
      %919 = vrot.lane.b32.xlu0 %v833, 24
      %v920 = vpop.permute.xlu0 %919
      %921 = vrot.lane.b32.xlu0 %v835, 24
      %v922 = vpop.permute.xlu0 %921
      %923 = vrot.lane.b32.xlu0 %v837, 24
      %v924 = vpop.permute.xlu0 %923
      %925 = vrot.lane.b32.xlu0 %v839, 24
      %v926 = vpop.permute.xlu0 %925
      %927 = vrot.lane.b32.xlu0 %v841, 24
      %v928 = vpop.permute.xlu0 %927
      %929 = vrot.lane.b32.xlu0 %v843, 24
      %v930 = vpop.permute.xlu0 %929
      %931 = vrot.lane.b32.xlu0 %v845, 24
      %v932 = vpop.permute.xlu0 %931
      %933 = vrot.lane.b32.xlu0 %v847, 24
      %v934 = vpop.permute.xlu0 %933
      %935 = vrot.lane.b32.xlu0 %v849, 24
      %v936 = vpop.permute.xlu0 %935
      %937 = vrot.lane.b32.xlu0 %v851, 24
      %v938 = vpop.permute.xlu0 %937
      %939 = vrot.lane.b32.xlu0 %v853, 24
      %v940 = vpop.permute.xlu0 %939
      %941 = vrot.lane.b32.xlu0 %v855, 24
      %v942 = vpop.permute.xlu0 %941
      %943 = vrot.lane.b32.xlu0 %v857, 24
      %v944 = vpop.permute.xlu0 %943
      %945 = vrot.lane.b32.xlu0 %v859, 24
      %v946 = vpop.permute.xlu0 %945
      %947 = vrot.lane.b32.xlu0 %v861, 24
      %v948 = vpop.permute.xlu0 %947
      %949 = vrot.lane.b32.xlu0 %v914, 24
      %v950 = vpop.permute.xlu0 %949
      %951 = vrot.lane.b32.xlu0 %v916, 24
      %v952 = vpop.permute.xlu0 %951
      %v954 = vunpack.c.l.b16 %v283
      %v955 = vpack.c.b16 %v954, %v954
      %vm956 = vsmask.f32 5376
      %v958 = vshrl.u32 %v908, 16
      %v960 = vrot.slane %v958, 2
      %v961 = vshll.u32 %v908, 16
      %v963 = vrot.slane %v961, 3
      %v964 = vor.u32 %v960, %v963
      %v965 = vrot.slane %v407, 2
      %v966 = vrot.slane %v403, 3
      %v967 = vor.u32 %v965, %v966
      %v968 = vsel %vm956, %v964, %v967
      %v969 = vrot.slane %v415, 2
      %v970 = vrot.slane %v411, 3
      %v971 = vor.u32 %v969, %v970
      %v972 = vsel %vm956, %v967, %v971
      %v973 = vrot.slane %v423, 2
      %v974 = vrot.slane %v419, 3
      %v975 = vor.u32 %v973, %v974
      %v976 = vsel %vm956, %v971, %v975
      %v977 = vrot.slane %v431, 2
      %v978 = vrot.slane %v427, 3
      %v979 = vor.u32 %v977, %v978
      %v980 = vsel %vm956, %v975, %v979
      %v981 = vrot.slane %v439, 2
      %v982 = vrot.slane %v435, 3
      %v983 = vor.u32 %v981, %v982
      %v984 = vsel %vm956, %v979, %v983
      %v985 = vrot.slane %v447, 2
      %v986 = vrot.slane %v443, 3
      %v987 = vor.u32 %v985, %v986
      %v988 = vsel %vm956, %v983, %v987
      %v989 = vrot.slane %v455, 2
      %v990 = vrot.slane %v451, 3
      %v991 = vor.u32 %v989, %v990
      %v992 = vsel %vm956, %v987, %v991
      %v993 = vrot.slane %v463, 2
      %v994 = vrot.slane %v459, 3
      %v995 = vor.u32 %v993, %v994
      %v996 = vsel %vm956, %v991, %v995
      %v997 = vrot.slane %v471, 2
      %v998 = vrot.slane %v467, 3
      %v999 = vor.u32 %v997, %v998
      %v1000 = vsel %vm956, %v995, %v999
      %v1001 = vrot.slane %v479, 2
      %v1002 = vrot.slane %v475, 3
      %v1003 = vor.u32 %v1001, %v1002
      %v1004 = vsel %vm956, %v999, %v1003
      %v1005 = vrot.slane %v487, 2
      %v1006 = vrot.slane %v483, 3
      %v1007 = vor.u32 %v1005, %v1006
      %v1008 = vsel %vm956, %v1003, %v1007
      %v1009 = vrot.slane %v495, 2
      %v1010 = vrot.slane %v491, 3
      %v1011 = vor.u32 %v1009, %v1010
      %v1012 = vsel %vm956, %v1007, %v1011
      %v1013 = vrot.slane %v503, 2
      %v1014 = vrot.slane %v499, 3
      %v1015 = vor.u32 %v1013, %v1014
      %v1016 = vsel %vm956, %v1011, %v1015
      %v1017 = vrot.slane %v511, 2
      %v1018 = vrot.slane %v507, 3
      %v1019 = vor.u32 %v1017, %v1018
      %v1020 = vsel %vm956, %v1015, %v1019
      %v1021 = vrot.slane %v519, 2
      %v1022 = vrot.slane %v515, 3
      %v1023 = vor.u32 %v1021, %v1022
      %v1024 = vsel %vm956, %v1019, %v1023
      %v1025 = vrot.slane %v770, 2
      %v1026 = vrot.slane %v773, 3
      %v1027 = vor.u32 %v1025, %v1026
      %v1028 = vsel %vm956, %v1023, %v1027
      %v1030 = vshrl.u32 %v909, 16
      %v1032 = vrot.slane %v1030, 2
      %v1033 = vshll.u32 %v909, 16
      %v1035 = vrot.slane %v1033, 3
      %v1036 = vor.u32 %v1032, %v1035
      %v1037 = vsel %vm956, %v1027, %v1036
      %v1039 = vshrl.u32 %v955, 16
      %v1041 = vrot.slane %v1039, 2
      %v1042 = vshll.u32 %v955, 16
      %v1044 = vrot.slane %v1042, 3
      %v1045 = vor.u32 %v1041, %v1044
      %v1046 = vsel %vm956, %v1036, %v1045
      %1047 = vrot.lane.b32.xlu0 %v968, 28
      %v1048 = vpop.permute.xlu0 %1047
      %1049 = vrot.lane.b32.xlu0 %v972, 28
      %v1050 = vpop.permute.xlu0 %1049
      %1051 = vrot.lane.b32.xlu0 %v976, 28
      %v1052 = vpop.permute.xlu0 %1051
      %1053 = vrot.lane.b32.xlu0 %v980, 28
      %v1054 = vpop.permute.xlu0 %1053
      %1055 = vrot.lane.b32.xlu0 %v984, 28
      %v1056 = vpop.permute.xlu0 %1055
      %1057 = vrot.lane.b32.xlu0 %v988, 28
      %v1058 = vpop.permute.xlu0 %1057
      %1059 = vrot.lane.b32.xlu0 %v992, 28
      %v1060 = vpop.permute.xlu0 %1059
      %1061 = vrot.lane.b32.xlu0 %v996, 28
      %v1062 = vpop.permute.xlu0 %1061
      %1063 = vrot.lane.b32.xlu0 %v1000, 28
      %v1064 = vpop.permute.xlu0 %1063
      %1065 = vrot.lane.b32.xlu0 %v1004, 28
      %v1066 = vpop.permute.xlu0 %1065
      %1067 = vrot.lane.b32.xlu0 %v1008, 28
      %v1068 = vpop.permute.xlu0 %1067
      %1069 = vrot.lane.b32.xlu0 %v1012, 28
      %v1070 = vpop.permute.xlu0 %1069
      %1071 = vrot.lane.b32.xlu0 %v1016, 28
      %v1072 = vpop.permute.xlu0 %1071
      %1073 = vrot.lane.b32.xlu0 %v1020, 28
      %v1074 = vpop.permute.xlu0 %1073
      %1075 = vrot.lane.b32.xlu0 %v1024, 28
      %v1076 = vpop.permute.xlu0 %1075
      %1077 = vrot.lane.b32.xlu0 %v1028, 28
      %v1078 = vpop.permute.xlu0 %1077
      %1079 = vrot.lane.b32.xlu0 %v1037, 28
      %v1080 = vpop.permute.xlu0 %1079
      %1081 = vrot.lane.b32.xlu0 %v1046, 28
      %v1082 = vpop.permute.xlu0 %1081
      %v1084 = vunpack.c.l.b16 %v284
      %v1085 = vpack.c.b16 %v326, %v1084
      %vm1086 = vcmask 1044480
      %v1087 = vrot.slane %v1085, 3
      %v1088 = vrot.slane %v360, 3
      %v1089 = vsel %vm1086, %v1087, %v1088
      %v1090 = vrot.slane %v361, 3
      %v1091 = vsel %vm1086, %v1088, %v1090
      %v1092 = vrot.slane %v362, 3
      %v1093 = vsel %vm1086, %v1090, %v1092
      %v1094 = vrot.slane %v363, 3
      %v1095 = vsel %vm1086, %v1092, %v1094
      %v1096 = vrot.slane %v364, 3
      %v1097 = vsel %vm1086, %v1094, %v1096
      %v1098 = vrot.slane %v365, 3
      %v1099 = vsel %vm1086, %v1096, %v1098
      %v1100 = vrot.slane %v366, 3
      %v1101 = vsel %vm1086, %v1098, %v1100
      %v1102 = vrot.slane %v367, 3
      %v1103 = vsel %vm1086, %v1100, %v1102
      %v1104 = vrot.slane %v368, 3
      %v1105 = vsel %vm1086, %v1102, %v1104
      %v1106 = vrot.slane %v369, 3
      %v1107 = vsel %vm1086, %v1104, %v1106
      %v1108 = vrot.slane %v370, 3
      %v1109 = vsel %vm1086, %v1106, %v1108
      %v1110 = vrot.slane %v371, 3
      %v1111 = vsel %vm1086, %v1108, %v1110
      %v1112 = vrot.slane %v372, 3
      %v1113 = vsel %vm1086, %v1110, %v1112
      %v1114 = vrot.slane %v373, 3
      %v1115 = vsel %vm1086, %v1112, %v1114
      %v1116 = vrot.slane %v374, 3
      %v1117 = vsel %vm1086, %v1114, %v1116
      %v1118 = vrot.slane %v649, 3
      %v1119 = vsel %vm1086, %v1116, %v1118
      %v1120 = vrot.slane %v909, 3
      %v1121 = vsel %vm1086, %v1118, %v1120
      %v1122 = vrot.slane %v955, 3
      %v1123 = vsel %vm1086, %v1120, %v1122
      %1124 = vrot.lane.b32.xlu0 %v1089, 32
      %v1125 = vpop.permute.xlu0 %1124
      %1126 = vrot.lane.b32.xlu0 %v1091, 32
      %v1127 = vpop.permute.xlu0 %1126
      %1128 = vrot.lane.b32.xlu0 %v1093, 32
      %v1129 = vpop.permute.xlu0 %1128
      %1130 = vrot.lane.b32.xlu0 %v1095, 32
      %v1131 = vpop.permute.xlu0 %1130
      %1132 = vrot.lane.b32.xlu0 %v1097, 32
      %v1133 = vpop.permute.xlu0 %1132
      %1134 = vrot.lane.b32.xlu0 %v1099, 32
      %v1135 = vpop.permute.xlu0 %1134
      %1136 = vrot.lane.b32.xlu0 %v1101, 32
      %v1137 = vpop.permute.xlu0 %1136
      %1138 = vrot.lane.b32.xlu0 %v1103, 32
      %v1139 = vpop.permute.xlu0 %1138
      %1140 = vrot.lane.b32.xlu0 %v1105, 32
      %v1141 = vpop.permute.xlu0 %1140
      %1142 = vrot.lane.b32.xlu0 %v1107, 32
      %v1143 = vpop.permute.xlu0 %1142
      %1144 = vrot.lane.b32.xlu0 %v1109, 32
      %v1145 = vpop.permute.xlu0 %1144
      %1146 = vrot.lane.b32.xlu0 %v1111, 32
      %v1147 = vpop.permute.xlu0 %1146
      %1148 = vrot.lane.b32.xlu0 %v1113, 32
      %v1149 = vpop.permute.xlu0 %1148
      %1150 = vrot.lane.b32.xlu0 %v1115, 32
      %v1151 = vpop.permute.xlu0 %1150
      %1152 = vrot.lane.b32.xlu0 %v1117, 32
      %v1153 = vpop.permute.xlu0 %1152
      %1154 = vrot.lane.b32.xlu0 %v1119, 32
      %v1155 = vpop.permute.xlu0 %1154
      %1156 = vrot.lane.b32.xlu0 %v1121, 32
      %v1157 = vpop.permute.xlu0 %1156
      %1158 = vrot.lane.b32.xlu0 %v1123, 32
      %v1159 = vpop.permute.xlu0 %1158
      %vm1160 = vcmask 31744
      %v1162 = vsel %vm1160, %v357, %v528
      %v1164 = vsel %vm1160, %v358, %v530
      %v1166 = vsel %vm1160, %v359, %v532
      %v1168 = vsel %vm1160, %v360, %v534
      %v1170 = vsel %vm1160, %v361, %v536
      %v1172 = vsel %vm1160, %v362, %v538
      %v1174 = vsel %vm1160, %v363, %v540
      %v1176 = vsel %vm1160, %v364, %v542
      %v1178 = vsel %vm1160, %v365, %v544
      %v1180 = vsel %vm1160, %v366, %v546
      %v1182 = vsel %vm1160, %v367, %v548
      %v1184 = vsel %vm1160, %v368, %v550
      %v1186 = vsel %vm1160, %v369, %v552
      %v1188 = vsel %vm1160, %v370, %v554
      %v1190 = vsel %vm1160, %v371, %v556
      %v1192 = vsel %vm1160, %v372, %v558
      %v1194 = vsel %vm1160, %v373, %v560
      %v1196 = vsel %vm1160, %v374, %v562
      %vm1197 = vcmask 64512
      %v1199 = vsel %vm1197, %v1162, %v605
      %v1201 = vsel %vm1197, %v1164, %v607
      %v1203 = vsel %vm1197, %v1166, %v609
      %v1205 = vsel %vm1197, %v1168, %v611
      %v1207 = vsel %vm1197, %v1170, %v613
      %v1209 = vsel %vm1197, %v1172, %v615
      %v1211 = vsel %vm1197, %v1174, %v617
      %v1213 = vsel %vm1197, %v1176, %v619
      %v1215 = vsel %vm1197, %v1178, %v621
      %v1217 = vsel %vm1197, %v1180, %v623
      %v1219 = vsel %vm1197, %v1182, %v625
      %v1221 = vsel %vm1197, %v1184, %v627
      %v1223 = vsel %vm1197, %v1186, %v629
      %v1225 = vsel %vm1197, %v1188, %v631
      %v1227 = vsel %vm1197, %v1190, %v633
      %v1229 = vsel %vm1197, %v1192, %v635
      %v1231 = vsel %vm1197, %v1194, %v637
      %v1233 = vsel %vm1197, %v1196, %v639
      %vm1234 = vcmask 97280
      %v1236 = vsel %vm1234, %v1199, %v658
      %v1238 = vsel %vm1234, %v1201, %v660
      %v1240 = vsel %vm1234, %v1203, %v662
      %v1242 = vsel %vm1234, %v1205, %v664
      %v1244 = vsel %vm1234, %v1207, %v666
      %v1246 = vsel %vm1234, %v1209, %v668
      %v1248 = vsel %vm1234, %v1211, %v670
      %v1250 = vsel %vm1234, %v1213, %v672
      %v1252 = vsel %vm1234, %v1215, %v674
      %v1254 = vsel %vm1234, %v1217, %v676
      %v1256 = vsel %vm1234, %v1219, %v678
      %v1258 = vsel %vm1234, %v1221, %v680
      %v1260 = vsel %vm1234, %v1223, %v682
      %v1262 = vsel %vm1234, %v1225, %v684
      %v1264 = vsel %vm1234, %v1227, %v686
      %v1266 = vsel %vm1234, %v1229, %v688
      %v1268 = vsel %vm1234, %v1231, %v690
      %v1270 = vsel %vm1234, %v1233, %v692
      %vm1271 = vcmask 130048
      %v1273 = vsel %vm1271, %v1236, %v788
      %v1275 = vsel %vm1271, %v1238, %v790
      %v1277 = vsel %vm1271, %v1240, %v792
      %v1279 = vsel %vm1271, %v1242, %v794
      %v1281 = vsel %vm1271, %v1244, %v796
      %v1283 = vsel %vm1271, %v1246, %v798
      %v1285 = vsel %vm1271, %v1248, %v800
      %v1287 = vsel %vm1271, %v1250, %v802
      %v1289 = vsel %vm1271, %v1252, %v804
      %v1291 = vsel %vm1271, %v1254, %v806
      %v1293 = vsel %vm1271, %v1256, %v808
      %v1295 = vsel %vm1271, %v1258, %v810
      %v1297 = vsel %vm1271, %v1260, %v812
      %v1299 = vsel %vm1271, %v1262, %v814
      %v1301 = vsel %vm1271, %v1264, %v816
      %v1303 = vsel %vm1271, %v1266, %v818
      %v1305 = vsel %vm1271, %v1268, %v820
      %v1307 = vsel %vm1271, %v1270, %v822
      %vm1308 = vcmask 162816
      %v1310 = vsel %vm1308, %v1273, %v865
      %v1312 = vsel %vm1308, %v1275, %v867
      %v1314 = vsel %vm1308, %v1277, %v869
      %v1316 = vsel %vm1308, %v1279, %v871
      %v1318 = vsel %vm1308, %v1281, %v873
      %v1320 = vsel %vm1308, %v1283, %v875
      %v1322 = vsel %vm1308, %v1285, %v877
      %v1324 = vsel %vm1308, %v1287, %v879
      %v1326 = vsel %vm1308, %v1289, %v881
      %v1328 = vsel %vm1308, %v1291, %v883
      %v1330 = vsel %vm1308, %v1293, %v885
      %v1332 = vsel %vm1308, %v1295, %v887
      %v1334 = vsel %vm1308, %v1297, %v889
      %v1336 = vsel %vm1308, %v1299, %v891
      %v1338 = vsel %vm1308, %v1301, %v893
      %v1340 = vsel %vm1308, %v1303, %v895
      %v1342 = vsel %vm1308, %v1305, %v897
      %v1344 = vsel %vm1308, %v1307, %v899
      %vm1345 = vcmask 195584
      %v1347 = vsel %vm1345, %v1310, %v918
      %v1349 = vsel %vm1345, %v1312, %v920
      %v1351 = vsel %vm1345, %v1314, %v922
      %v1353 = vsel %vm1345, %v1316, %v924
      %v1355 = vsel %vm1345, %v1318, %v926
      %v1357 = vsel %vm1345, %v1320, %v928
      %v1359 = vsel %vm1345, %v1322, %v930
      %v1361 = vsel %vm1345, %v1324, %v932
      %v1363 = vsel %vm1345, %v1326, %v934
      %v1365 = vsel %vm1345, %v1328, %v936
      %v1367 = vsel %vm1345, %v1330, %v938
      %v1369 = vsel %vm1345, %v1332, %v940
      %v1371 = vsel %vm1345, %v1334, %v942
      %v1373 = vsel %vm1345, %v1336, %v944
      %v1375 = vsel %vm1345, %v1338, %v946
      %v1377 = vsel %vm1345, %v1340, %v948
      %v1379 = vsel %vm1345, %v1342, %v950
      %v1381 = vsel %vm1345, %v1344, %v952
      %vm1382 = vcmask 228352
      %v1384 = vsel %vm1382, %v1347, %v1048
      %v1386 = vsel %vm1382, %v1349, %v1050
      %v1388 = vsel %vm1382, %v1351, %v1052
      %v1390 = vsel %vm1382, %v1353, %v1054
      %v1392 = vsel %vm1382, %v1355, %v1056
      %v1394 = vsel %vm1382, %v1357, %v1058
      %v1396 = vsel %vm1382, %v1359, %v1060
      %v1398 = vsel %vm1382, %v1361, %v1062
      %v1400 = vsel %vm1382, %v1363, %v1064
      %v1402 = vsel %vm1382, %v1365, %v1066
      %v1404 = vsel %vm1382, %v1367, %v1068
      %v1406 = vsel %vm1382, %v1369, %v1070
      %v1408 = vsel %vm1382, %v1371, %v1072
      %v1410 = vsel %vm1382, %v1373, %v1074
      %v1412 = vsel %vm1382, %v1375, %v1076
      %v1414 = vsel %vm1382, %v1377, %v1078
      %v1416 = vsel %vm1382, %v1379, %v1080
      %v1418 = vsel %vm1382, %v1381, %v1082
      %vm1419 = vcmask 261120
      %v1421 = vsel %vm1419, %v1384, %v1125
      %v1423 = vsel %vm1419, %v1386, %v1127
      %v1425 = vsel %vm1419, %v1388, %v1129
      %v1427 = vsel %vm1419, %v1390, %v1131
      %v1429 = vsel %vm1419, %v1392, %v1133
      %v1431 = vsel %vm1419, %v1394, %v1135
      %v1433 = vsel %vm1419, %v1396, %v1137
      %v1435 = vsel %vm1419, %v1398, %v1139
      %v1437 = vsel %vm1419, %v1400, %v1141
      %v1439 = vsel %vm1419, %v1402, %v1143
      %v1441 = vsel %vm1419, %v1404, %v1145
      %v1443 = vsel %vm1419, %v1406, %v1147
      %v1445 = vsel %vm1419, %v1408, %v1149
      %v1447 = vsel %vm1419, %v1410, %v1151
      %v1449 = vsel %vm1419, %v1412, %v1153
      %v1451 = vsel %vm1419, %v1414, %v1155
      %v1453 = vsel %vm1419, %v1416, %v1157
      %v1455 = vsel %vm1419, %v1418, %v1159
      %v1456 = vld [vmem:[%s1] sm:$0xf]
      %v1457 = vld [vmem:[%s1 + $0x4] sm:$0xf]
      %v1458 = vld [vmem:[%s1 + $0x8] sm:$0xf]
      %v1459 = vld [vmem:[%s1 + $0xc] sm:$0xf]
      %v1460 = vld [vmem:[%s1 + $0x10] sm:$0x3]
      %v1466 = vunpack.c.l.b16 %v1456
      %v1467 = vunpack.c.l.b16 %v1457
      %v1468 = vunpack.c.l.b16 %v1458
      %v1469 = vunpack.c.l.b16 %v1459
      %v1470 = vunpack.c.l.b16 %v1460
      %v1471 = vpack.c.b16 %v1467, %v1466
      %v1472 = vpack.c.b16 %v1469, %v1468
      %v1473 = vpack.c.b16 %v1470, %v1470
      %vm1476 = vcmask 293888
      %v1477 = vsel %vm1476, %v1421, 0
      %v1479 = vsel %vm1476, %v1423, 0
      %v1481 = vsel %vm1476, %v1425, 0
      %v1483 = vsel %vm1476, %v1427, 0
      %v1485 = vsel %vm1476, %v1429, 0
      %v1487 = vsel %vm1476, %v1431, 0
      %v1489 = vsel %vm1476, %v1433, 0
      %v1491 = vsel %vm1476, %v1435, 0
      %v1493 = vsel %vm1476, %v1437, 0
      %v1495 = vsel %vm1476, %v1439, 0
      %v1497 = vsel %vm1476, %v1441, 0
      %v1499 = vsel %vm1476, %v1443, 0
      %v1501 = vsel %vm1476, %v1445, 0
      %v1503 = vsel %vm1476, %v1447, 0
      %v1505 = vsel %vm1476, %v1449, 0
      %v1507 = vsel %vm1476, %v1451, 0
      %v1509 = vsel %vm1476, %v1453, 0
      %v1511 = vsel %vm1476, %v1455, 0
      %vm1513 = vcmask 1041408
      %v1515 = vsel %vm1513, %v1473, 0
      %1517 = vmatprep.subr.bf16.mxu0 0
      %1518 = vmatpush1.bf16.msra.mxu0 %v1471
      %1519 = vmatprep.subr.bf16.mxu0 0
      %1520 = vmatpush1.bf16.msra.mxu0 %v1472
      %1521 = vmatprep.subr.bf16.mxu0 0
      %1522 = vmatpush1.bf16.msra.mxu0 %v1515
      %1523 = vmatprep.subr.bf16.mxu0 0
      %1524 = vmatpush1.bf16.msra.mxu0 0
      %1525 = vmatprep.subr.bf16.mxu0 0
      %1526 = vmatpush1.bf16.msra.mxu0 0
      %1527 = vmatprep.subr.bf16.mxu0 0
      %1528 = vmatpush1.bf16.msra.mxu0 0
      %1529 = vmatprep.subr.bf16.mxu0 0
      %1530 = vmatpush1.bf16.msra.mxu0 0
      %1531 = vmatprep.subr.bf16.mxu0 0
      %1532 = vmatpush1.bf16.msra.mxu0 0
      %1533 = vmatprep.subr.bf16.mxu0 0
      %1534 = vmatpush1.bf16.msra.mxu0 0
      %1535 = vmatprep.subr.bf16.mxu0 0
      %1536 = vmatpush1.bf16.msra.mxu0 0
      %1537 = vmatprep.subr.bf16.mxu0 0
      %1538 = vmatpush1.bf16.msra.mxu0 0
      %1539 = vmatprep.subr.bf16.mxu0 0
      %1540 = vmatpush1.bf16.msra.mxu0 0
      %1541 = vmatprep.subr.bf16.mxu0 0
      %1542 = vmatpush1.bf16.msra.mxu0 0
      %1543 = vmatprep.subr.bf16.mxu0 0
      %1544 = vmatpush1.bf16.msra.mxu0 0
      %1545 = vmatprep.subr.bf16.mxu0 0
      %1546 = vmatpush1.bf16.msra.mxu0 0
      %1547 = vmatprep.subr.bf16.mxu0 0
      %1548 = vmatpush1.bf16.msra.mxu0 0
      %1549 = vmatprep.mubr.bf16.mxu0 0
      %1550 = vmatmul.mubr.bf16.gmra.mrb[0].mxu0 %v1477
      %v1551 = vpop.f32.mrb[0].mxu0
      %v1552 = vadd.f32 0.0, %v1551
      %v1553 = vpop.f32.mrb[0].mxu0
      %v1554 = vpop.f32.mrb[0].mxu0
      %v1555 = vadd.f32 0.0, %v1554
      %v1556 = vpop.f32.mrb[0].mxu0
      %1557 = vmatprep.mubr.bf16.mxu0 0
      %1558 = vmatmul.mubr.bf16.gmra.mrb[0].mxu0 %v1479
      %v1559 = vpop.f32.mrb[0].mxu0
      %v1560 = vadd.f32 0.0, %v1559
      %v1561 = vpop.f32.mrb[0].mxu0
      %v1562 = vpop.f32.mrb[0].mxu0
      %v1563 = vadd.f32 0.0, %v1562
      %v1564 = vpop.f32.mrb[0].mxu0
      %1565 = vmatprep.mubr.bf16.mxu0 0
      %1566 = vmatmul.mubr.bf16.gmra.mrb[0].mxu0 %v1481
      %v1567 = vpop.f32.mrb[0].mxu0
      %v1568 = vadd.f32 0.0, %v1567
      %v1569 = vpop.f32.mrb[0].mxu0
      %v1570 = vpop.f32.mrb[0].mxu0
      %v1571 = vadd.f32 0.0, %v1570
      %v1572 = vpop.f32.mrb[0].mxu0
      %1573 = vmatprep.mubr.bf16.mxu0 0
      %1574 = vmatmul.mubr.bf16.gmra.mrb[0].mxu0 %v1483
      %v1575 = vpop.f32.mrb[0].mxu0
      %v1576 = vadd.f32 0.0, %v1575
      %v1577 = vpop.f32.mrb[0].mxu0
      %v1578 = vpop.f32.mrb[0].mxu0
      %v1579 = vadd.f32 0.0, %v1578
      %v1580 = vpop.f32.mrb[0].mxu0
      %1581 = vmatprep.mubr.bf16.mxu0 0
      %1582 = vmatmul.mubr.bf16.gmra.mrb[0].mxu0 %v1485
      %v1583 = vpop.f32.mrb[0].mxu0
      %v1584 = vadd.f32 0.0, %v1583
      %v1585 = vpop.f32.mrb[0].mxu0
      %v1586 = vpop.f32.mrb[0].mxu0
      %v1587 = vadd.f32 0.0, %v1586
      %v1588 = vpop.f32.mrb[0].mxu0
      %1589 = vmatprep.mubr.bf16.mxu0 0
      %1590 = vmatmul.mubr.bf16.gmra.mrb[0].mxu0 %v1487
      %v1591 = vpop.f32.mrb[0].mxu0
      %v1592 = vadd.f32 0.0, %v1591
      %v1593 = vpop.f32.mrb[0].mxu0
      %v1594 = vpop.f32.mrb[0].mxu0
      %v1595 = vadd.f32 0.0, %v1594
      %v1596 = vpop.f32.mrb[0].mxu0
      %1597 = vmatprep.mubr.bf16.mxu0 0
      %1598 = vmatmul.mubr.bf16.gmra.mrb[0].mxu0 %v1489
      %v1599 = vpop.f32.mrb[0].mxu0
      %v1600 = vadd.f32 0.0, %v1599
      %v1601 = vpop.f32.mrb[0].mxu0
      %v1602 = vpop.f32.mrb[0].mxu0
      %v1603 = vadd.f32 0.0, %v1602
      %v1604 = vpop.f32.mrb[0].mxu0
      %1605 = vmatprep.mubr.bf16.mxu0 0
      %1606 = vmatmul.mubr.bf16.gmra.mrb[0].mxu0 %v1491
      %v1607 = vpop.f32.mrb[0].mxu0
      %v1608 = vadd.f32 0.0, %v1607
      %v1609 = vpop.f32.mrb[0].mxu0
      %v1610 = vpop.f32.mrb[0].mxu0
      %v1611 = vadd.f32 0.0, %v1610
      %v1612 = vpop.f32.mrb[0].mxu0
      %1613 = vmatprep.mubr.bf16.mxu0 0
      %1614 = vmatmul.mubr.bf16.gmra.mrb[0].mxu0 %v1493
      %v1615 = vpop.f32.mrb[0].mxu0
      %v1616 = vadd.f32 0.0, %v1615
      %v1617 = vpop.f32.mrb[0].mxu0
      %v1618 = vpop.f32.mrb[0].mxu0
      %v1619 = vadd.f32 0.0, %v1618
      %v1620 = vpop.f32.mrb[0].mxu0
      %1621 = vmatprep.mubr.bf16.mxu0 0
      %1622 = vmatmul.mubr.bf16.gmra.mrb[0].mxu0 %v1495
      %v1623 = vpop.f32.mrb[0].mxu0
      %v1624 = vadd.f32 0.0, %v1623
      %v1625 = vpop.f32.mrb[0].mxu0
      %v1626 = vpop.f32.mrb[0].mxu0
      %v1627 = vadd.f32 0.0, %v1626
      %v1628 = vpop.f32.mrb[0].mxu0
      %1629 = vmatprep.mubr.bf16.mxu0 0
      %1630 = vmatmul.mubr.bf16.gmra.mrb[0].mxu0 %v1497
      %v1631 = vpop.f32.mrb[0].mxu0
      %v1632 = vadd.f32 0.0, %v1631
      %v1633 = vpop.f32.mrb[0].mxu0
      %v1634 = vpop.f32.mrb[0].mxu0
      %v1635 = vadd.f32 0.0, %v1634
      %v1636 = vpop.f32.mrb[0].mxu0
      %1637 = vmatprep.mubr.bf16.mxu0 0
      %1638 = vmatmul.mubr.bf16.gmra.mrb[0].mxu0 %v1499
      %v1639 = vpop.f32.mrb[0].mxu0
      %v1640 = vadd.f32 0.0, %v1639
      %v1641 = vpop.f32.mrb[0].mxu0
      %v1642 = vpop.f32.mrb[0].mxu0
      %v1643 = vadd.f32 0.0, %v1642
      %v1644 = vpop.f32.mrb[0].mxu0
      %1645 = vmatprep.mubr.bf16.mxu0 0
      %1646 = vmatmul.mubr.bf16.gmra.mrb[0].mxu0 %v1501
      %v1647 = vpop.f32.mrb[0].mxu0
      %v1648 = vadd.f32 0.0, %v1647
      %v1649 = vpop.f32.mrb[0].mxu0
      %v1650 = vpop.f32.mrb[0].mxu0
      %v1651 = vadd.f32 0.0, %v1650
      %v1652 = vpop.f32.mrb[0].mxu0
      %1653 = vmatprep.mubr.bf16.mxu0 0
      %1654 = vmatmul.mubr.bf16.gmra.mrb[0].mxu0 %v1503
      %v1655 = vpop.f32.mrb[0].mxu0
      %v1656 = vadd.f32 0.0, %v1655
      %v1657 = vpop.f32.mrb[0].mxu0
      %v1658 = vpop.f32.mrb[0].mxu0
      %v1659 = vadd.f32 0.0, %v1658
      %v1660 = vpop.f32.mrb[0].mxu0
      %1661 = vmatprep.mubr.bf16.mxu0 0
      %1662 = vmatmul.mubr.bf16.gmra.mrb[0].mxu0 %v1505
      %v1663 = vpop.f32.mrb[0].mxu0
      %v1664 = vadd.f32 0.0, %v1663
      %v1665 = vpop.f32.mrb[0].mxu0
      %v1666 = vpop.f32.mrb[0].mxu0
      %v1667 = vadd.f32 0.0, %v1666
      %v1668 = vpop.f32.mrb[0].mxu0
      %1669 = vmatprep.mubr.bf16.mxu0 0
      %1670 = vmatmul.mubr.bf16.gmra.mrb[0].mxu0 %v1507
      %v1671 = vpop.f32.mrb[0].mxu0
      %v1672 = vadd.f32 0.0, %v1671
      %v1673 = vpop.f32.mrb[0].mxu0
      %v1674 = vpop.f32.mrb[0].mxu0
      %v1675 = vadd.f32 0.0, %v1674
      %v1676 = vpop.f32.mrb[0].mxu0
      %1677 = vmatprep.mubr.bf16.mxu0 0
      %1678 = vmatmul.mubr.bf16.gmra.mrb[0].mxu0 %v1509
      %v1679 = vpop.f32.mrb[0].mxu0
      %v1680 = vadd.f32 0.0, %v1679
      %v1681 = vpop.f32.mrb[0].mxu0
      %v1682 = vpop.f32.mrb[0].mxu0
      %v1683 = vadd.f32 0.0, %v1682
      %v1684 = vpop.f32.mrb[0].mxu0
      %1685 = vmatprep.mubr.bf16.mxu0 0
      %1686 = vmatmul.mubr.bf16.gmra.mrb[0].mxu0 %v1511
      %v1687 = vpop.f32.mrb[0].mxu0
      %v1688 = vadd.f32 0.0, %v1687
      %v1689 = vpop.f32.mrb[0].mxu0
      %v1690 = vpop.f32.mrb[0].mxu0
      %v1691 = vadd.f32 0.0, %v1690
      %v1692 = vpop.f32.mrb[0].mxu0
      %1693 = vdwg.mxu0
      %v1694 = vld [vmem:[%s2] sm:$0x1]
      %v1696 = vlaneseq
      %v1697 = vshrl.u32 %v1696, 7
      %v1698 = vsub.s32 0, %v1697
      %v1699 = vrot.slane %v1694, %v1698
      %v1701 = vmul.f32 %v1552, %v1699
      %v1702 = vmul.f32 %v1555, %v1699
      %v1703 = vmul.f32 %v1560, %v1699
      %v1704 = vmul.f32 %v1563, %v1699
      %v1705 = vmul.f32 %v1568, %v1699
      %v1706 = vmul.f32 %v1571, %v1699
      %v1707 = vmul.f32 %v1576, %v1699
      %v1708 = vmul.f32 %v1579, %v1699
      %v1709 = vmul.f32 %v1584, %v1699
      %v1710 = vmul.f32 %v1587, %v1699
      %v1711 = vmul.f32 %v1592, %v1699
      %v1712 = vmul.f32 %v1595, %v1699
      %v1713 = vmul.f32 %v1600, %v1699
      %v1714 = vmul.f32 %v1603, %v1699
      %v1715 = vmul.f32 %v1608, %v1699
      %v1716 = vmul.f32 %v1611, %v1699
      %v1717 = vmul.f32 %v1616, %v1699
      %v1718 = vmul.f32 %v1619, %v1699
      %v1719 = vmul.f32 %v1624, %v1699
      %v1720 = vmul.f32 %v1627, %v1699
      %v1721 = vmul.f32 %v1632, %v1699
      %v1722 = vmul.f32 %v1635, %v1699
      %v1723 = vmul.f32 %v1640, %v1699
      %v1724 = vmul.f32 %v1643, %v1699
      %v1725 = vmul.f32 %v1648, %v1699
      %v1726 = vmul.f32 %v1651, %v1699
      %v1727 = vmul.f32 %v1656, %v1699
      %v1728 = vmul.f32 %v1659, %v1699
      %v1729 = vmul.f32 %v1664, %v1699
      %v1730 = vmul.f32 %v1667, %v1699
      %v1731 = vmul.f32 %v1672, %v1699
      %v1732 = vmul.f32 %v1675, %v1699
      %v1733 = vmul.f32 %v1680, %v1699
      %v1734 = vmul.f32 %v1683, %v1699
      %v1735 = vmul.f32 %v1688, %v1699
      %v1736 = vmul.f32 %v1691, %v1699
      %v1737 = vld [vmem:[%s3] sm:$0x1]
      %v1739 = vlaneseq
      %v1740 = vshrl.u32 %v1739, 7
      %v1741 = vsub.s32 0, %v1740
      %v1742 = vrot.slane %v1737, %v1741
      %v1744 = vadd.f32 %v1701, %v1742
      %v1745 = vadd.f32 %v1702, %v1742
      %v1746 = vadd.f32 %v1703, %v1742
      %v1747 = vadd.f32 %v1704, %v1742
      %v1748 = vadd.f32 %v1705, %v1742
      %v1749 = vadd.f32 %v1706, %v1742
      %v1750 = vadd.f32 %v1707, %v1742
      %v1751 = vadd.f32 %v1708, %v1742
      %v1752 = vadd.f32 %v1709, %v1742
      %v1753 = vadd.f32 %v1710, %v1742
      %v1754 = vadd.f32 %v1711, %v1742
      %v1755 = vadd.f32 %v1712, %v1742
      %v1756 = vadd.f32 %v1713, %v1742
      %v1757 = vadd.f32 %v1714, %v1742
      %v1758 = vadd.f32 %v1715, %v1742
      %v1759 = vadd.f32 %v1716, %v1742
      %v1760 = vadd.f32 %v1717, %v1742
      %v1761 = vadd.f32 %v1718, %v1742
      %v1762 = vadd.f32 %v1719, %v1742
      %v1763 = vadd.f32 %v1720, %v1742
      %v1764 = vadd.f32 %v1721, %v1742
      %v1765 = vadd.f32 %v1722, %v1742
      %v1766 = vadd.f32 %v1723, %v1742
      %v1767 = vadd.f32 %v1724, %v1742
      %v1768 = vadd.f32 %v1725, %v1742
      %v1769 = vadd.f32 %v1726, %v1742
      %v1770 = vadd.f32 %v1727, %v1742
      %v1771 = vadd.f32 %v1728, %v1742
      %v1772 = vadd.f32 %v1729, %v1742
      %v1773 = vadd.f32 %v1730, %v1742
      %v1774 = vadd.f32 %v1731, %v1742
      %v1775 = vadd.f32 %v1732, %v1742
      %v1776 = vadd.f32 %v1733, %v1742
      %v1777 = vadd.f32 %v1734, %v1742
      %v1778 = vadd.f32 %v1735, %v1742
      %v1779 = vadd.f32 %v1736, %v1742
      %v1780 = vmax.f32 %v1744, 0.0
      %v1781 = vmax.f32 %v1745, 0.0
      %v1782 = vmax.f32 %v1746, 0.0
      %v1783 = vmax.f32 %v1747, 0.0
      %v1784 = vmax.f32 %v1748, 0.0
      %v1785 = vmax.f32 %v1749, 0.0
      %v1786 = vmax.f32 %v1750, 0.0
      %v1787 = vmax.f32 %v1751, 0.0
      %v1788 = vmax.f32 %v1752, 0.0
      %v1789 = vmax.f32 %v1753, 0.0
      %v1790 = vmax.f32 %v1754, 0.0
      %v1791 = vmax.f32 %v1755, 0.0
      %v1792 = vmax.f32 %v1756, 0.0
      %v1793 = vmax.f32 %v1757, 0.0
      %v1794 = vmax.f32 %v1758, 0.0
      %v1795 = vmax.f32 %v1759, 0.0
      %v1796 = vmax.f32 %v1760, 0.0
      %v1797 = vmax.f32 %v1761, 0.0
      %v1798 = vmax.f32 %v1762, 0.0
      %v1799 = vmax.f32 %v1763, 0.0
      %v1800 = vmax.f32 %v1764, 0.0
      %v1801 = vmax.f32 %v1765, 0.0
      %v1802 = vmax.f32 %v1766, 0.0
      %v1803 = vmax.f32 %v1767, 0.0
      %v1804 = vmax.f32 %v1768, 0.0
      %v1805 = vmax.f32 %v1769, 0.0
      %v1806 = vmax.f32 %v1770, 0.0
      %v1807 = vmax.f32 %v1771, 0.0
      %v1808 = vmax.f32 %v1772, 0.0
      %v1809 = vmax.f32 %v1773, 0.0
      %v1810 = vmax.f32 %v1774, 0.0
      %v1811 = vmax.f32 %v1775, 0.0
      %v1812 = vmax.f32 %v1776, 0.0
      %v1813 = vmax.f32 %v1777, 0.0
      %v1814 = vmax.f32 %v1778, 0.0
      %v1815 = vmax.f32 %v1779, 0.0
      %v1816 = vpack.c.bf16 %v1781, %v1780
      %v1817 = vpack.c.bf16 %v1783, %v1782
      %v1818 = vpack.c.bf16 %v1785, %v1784
      %v1819 = vpack.c.bf16 %v1787, %v1786
      %v1820 = vpack.c.bf16 %v1789, %v1788
      %v1821 = vpack.c.bf16 %v1791, %v1790
      %v1822 = vpack.c.bf16 %v1793, %v1792
      %v1823 = vpack.c.bf16 %v1795, %v1794
      %v1824 = vpack.c.bf16 %v1797, %v1796
      %v1825 = vpack.c.bf16 %v1799, %v1798
      %v1826 = vpack.c.bf16 %v1801, %v1800
      %v1827 = vpack.c.bf16 %v1803, %v1802
      %v1828 = vpack.c.bf16 %v1805, %v1804
      %v1829 = vpack.c.bf16 %v1807, %v1806
      %v1830 = vpack.c.bf16 %v1809, %v1808
      %v1831 = vpack.c.bf16 %v1811, %v1810
      %v1832 = vpack.c.bf16 %v1813, %v1812
      %v1833 = vpack.c.bf16 %v1815, %v1814
      %v1852 = vunpack.c.l.b16 %v1816
      %v1853 = vunpack.c.h.b16 %v1816
      %v1854 = vunpack.c.l.b16 %v1817
      %v1855 = vunpack.c.h.b16 %v1817
      %v1856 = vunpack.c.l.b16 %v1818
      %v1857 = vunpack.c.h.b16 %v1818
      %v1858 = vunpack.c.l.b16 %v1819
      %v1859 = vunpack.c.h.b16 %v1819
      %v1860 = vunpack.c.l.b16 %v1820
      %v1861 = vunpack.c.h.b16 %v1820
      %v1862 = vunpack.c.l.b16 %v1821
      %v1863 = vunpack.c.h.b16 %v1821
      %v1864 = vunpack.c.l.b16 %v1822
      %v1865 = vunpack.c.h.b16 %v1822
      %v1866 = vunpack.c.l.b16 %v1823
      %v1867 = vunpack.c.h.b16 %v1823
      %v1868 = vunpack.c.l.b16 %v1824
      %v1869 = vunpack.c.h.b16 %v1824
      %v1870 = vunpack.c.l.b16 %v1825
      %v1871 = vunpack.c.h.b16 %v1825
      %v1872 = vunpack.c.l.b16 %v1826
      %v1873 = vunpack.c.h.b16 %v1826
      %v1874 = vunpack.c.l.b16 %v1827
      %v1875 = vunpack.c.h.b16 %v1827
      %v1876 = vunpack.c.l.b16 %v1828
      %v1877 = vunpack.c.h.b16 %v1828
      %v1878 = vunpack.c.l.b16 %v1829
      %v1879 = vunpack.c.h.b16 %v1829
      %v1880 = vunpack.c.l.b16 %v1830
      %v1881 = vunpack.c.h.b16 %v1830
      %v1882 = vunpack.c.l.b16 %v1831
      %v1883 = vunpack.c.h.b16 %v1831
      %v1884 = vunpack.c.l.b16 %v1832
      %v1885 = vunpack.c.h.b16 %v1832
      %v1886 = vunpack.c.l.b16 %v1833
      %v1887 = vunpack.c.h.b16 %v1833
      %v1888 = vpack.c.b16 %v1852, %v1852
      %v1889 = vpack.c.b16 %v1853, %v1853
      %v1890 = vpack.c.b16 %v1854, %v1854
      %v1891 = vpack.c.b16 %v1855, %v1855
      %v1892 = vpack.c.b16 %v1856, %v1856
      %v1893 = vpack.c.b16 %v1857, %v1857
      %v1894 = vpack.c.b16 %v1858, %v1858
      %v1895 = vpack.c.b16 %v1859, %v1859
      %v1896 = vpack.c.b16 %v1860, %v1860
      %v1897 = vpack.c.b16 %v1861, %v1861
      %v1898 = vpack.c.b16 %v1862, %v1862
      %v1899 = vpack.c.b16 %v1863, %v1863
      %v1900 = vpack.c.b16 %v1864, %v1864
      %v1901 = vpack.c.b16 %v1865, %v1865
      %v1902 = vpack.c.b16 %v1866, %v1866
      %v1903 = vpack.c.b16 %v1867, %v1867
      %v1904 = vpack.c.b16 %v1868, %v1868
      %v1905 = vpack.c.b16 %v1869, %v1869
      %v1906 = vpack.c.b16 %v1870, %v1870
      %v1907 = vpack.c.b16 %v1871, %v1871
      %v1908 = vpack.c.b16 %v1872, %v1872
      %v1909 = vpack.c.b16 %v1873, %v1873
      %v1910 = vpack.c.b16 %v1874, %v1874
      %v1911 = vpack.c.b16 %v1875, %v1875
      %v1912 = vpack.c.b16 %v1876, %v1876
      %v1913 = vpack.c.b16 %v1877, %v1877
      %v1914 = vpack.c.b16 %v1878, %v1878
      %v1915 = vpack.c.b16 %v1879, %v1879
      %v1916 = vpack.c.b16 %v1880, %v1880
      %v1917 = vpack.c.b16 %v1881, %v1881
      %v1918 = vpack.c.b16 %v1882, %v1882
      %v1919 = vpack.c.b16 %v1883, %v1883
      %v1920 = vpack.c.b16 %v1884, %v1884
      %v1921 = vpack.c.b16 %v1885, %v1885
      %v1922 = vpack.c.b16 %v1886, %v1886
      %v1923 = vpack.c.b16 %v1887, %v1887
      %1960 = vst [vmem:[%s233] sm:$0xf] %v1888
      %1961 = vst [vmem:[%s233 + $0x4] sm:$0xf] %v1889
      %1962 = vst [vmem:[%s233 + $0x8] sm:$0xf] %v1890
      %1963 = vst [vmem:[%s233 + $0xc] sm:$0xf] %v1891
      %1964 = vst [vmem:[%s233 + $0x10] sm:$0xf] %v1892
      %1965 = vst [vmem:[%s233 + $0x14] sm:$0xf] %v1893
      %1966 = vst [vmem:[%s233 + $0x18] sm:$0xf] %v1894
      %1967 = vst [vmem:[%s233 + $0x1c] sm:$0xf] %v1895
      %1968 = vst [vmem:[%s233 + $0x20] sm:$0xf] %v1896
      %1969 = vst [vmem:[%s233 + $0x24] sm:$0xf] %v1897
      %1970 = vst [vmem:[%s233 + $0x28] sm:$0xf] %v1898
      %1971 = vst [vmem:[%s233 + $0x2c] sm:$0xf] %v1899
      %1972 = vst [vmem:[%s233 + $0x30] sm:$0xf] %v1900
      %1973 = vst [vmem:[%s233 + $0x34] sm:$0xf] %v1901
      %1974 = vst [vmem:[%s233 + $0x38] sm:$0xf] %v1902
      %1975 = vst [vmem:[%s233 + $0x3c] sm:$0xf] %v1903
      %1976 = vst [vmem:[%s233 + $0x40] sm:$0xf] %v1904
      %1977 = vst [vmem:[%s233 + $0x44] sm:$0xf] %v1905
      %1978 = vst [vmem:[%s233 + $0x48] sm:$0xf] %v1906
      %1979 = vst [vmem:[%s233 + $0x4c] sm:$0xf] %v1907
      %1980 = vst [vmem:[%s233 + $0x50] sm:$0xf] %v1908
      %1981 = vst [vmem:[%s233 + $0x54] sm:$0xf] %v1909
      %1982 = vst [vmem:[%s233 + $0x58] sm:$0xf] %v1910
      %1983 = vst [vmem:[%s233 + $0x5c] sm:$0xf] %v1911
      %1984 = vst [vmem:[%s233 + $0x60] sm:$0xf] %v1912
      %1985 = vst [vmem:[%s233 + $0x64] sm:$0xf] %v1913
      %1986 = vst [vmem:[%s233 + $0x68] sm:$0xf] %v1914
      %1987 = vst [vmem:[%s233 + $0x6c] sm:$0xf] %v1915
      %1988 = vst [vmem:[%s233 + $0x70] sm:$0xf] %v1916
      %1989 = vst [vmem:[%s233 + $0x74] sm:$0xf] %v1917
      %1990 = vst [vmem:[%s233 + $0x78] sm:$0xf] %v1918
      %1991 = vst [vmem:[%s233 + $0x7c] sm:$0xf] %v1919
      %1992 = vst [vmem:[%s233 + $0x80] sm:$0xf] %v1920
      %1993 = vst [vmem:[%s233 + $0x84] sm:$0xf] %v1921
      %1994 = vst [vmem:[%s233 + $0x88] sm:$0xf] %v1922
      %1995 = vst [vmem:[%s233 + $0x8c] sm:$0xf] %v1923
      %p1996 = scmp.lt.s32.totalorder %s19, 1
      %s1997 = scalar_select %p1996, %s19, 1
      %p1998 = scmp.lt.s32.totalorder %s20, 0
      %s1999 = scalar_select %p1998, %s20, 0
      %s2000 = smul.addr %s1999, 36
      %s2001 = smul.addr %s1997, 36
      %s2002 = sadd.s32 %s2000, %s2001
      %s2003 = smul.addr %s2002, 4
      %s2004 = scalar_lea.vmem %s4, %s2003
      // Predicated region
      $region37: #{basic_block_1w4a_forward.1} parent=35 // pred_check
        %p2005 = pneg %p138
      $region38: #{basic_block_1w4a_forward.1} parent=35 // pred_check_branch
        %2007 = sbr.rel (%p2005) target = $region40
      $region39: #{basic_block_1w4a_forward.1} parent=35 // pred_region
        _
      $region40: #{basic_block_1w4a_forward.1} parent=35 // pred_fallthru
        _
    $region36: #{basic_block_1w4a_forward.1} parent=5 // pred_fallthru
      _
    %p2008 = scmp.le.s32.totalorder 2, %s10
    // Predicated region
    $region41: #{basic_block_1w4a_forward.1} parent=5 // pred_check
      %p2009 = pneg %p2008
    $region42: #{basic_block_1w4a_forward.1} parent=5 // pred_check_branch
      %2011 = sbr.rel (%p2009) target = $region44
    $region43: #{basic_block_1w4a_forward.1} parent=5 // pred_region
      %s2012 = ssub.s32 %s10, 2
      // Predicated region
      $region45: #{basic_block_1w4a_forward.1} parent=43 // pred_check
        %p2013 = pneg %p144
      $region46: #{basic_block_1w4a_forward.1} parent=43 // pred_check_branch
        %2015 = sbr.rel (%p2013) target = $region48
      $region47: #{basic_block_1w4a_forward.1} parent=43 // pred_region
        %p2016 = scmp.lt.s32.totalorder %s21, 1
        %s2017 = scalar_select %p2016, %s21, 1
        %p2018 = scmp.lt.s32.totalorder %s22, 0
        %s2019 = scalar_select %p2018, %s22, 0
        %s2020 = smul.addr %s2019, 36
        %s2021 = smul.addr %s2017, 36
        %s2022 = sadd.s32 %s2020, %s2021
        %s2023 = smul.addr %s2022, 4
        %s2024 = scalar_lea.vmem %s4, %s2023
      $region48: #{basic_block_1w4a_forward.1} parent=43 // pred_fallthru
        _
    $region44: #{basic_block_1w4a_forward.1} parent=5 // pred_fallthru
      _
  $region6: #{basic_block_1w4a_forward.1} parent=0 // loop_footer
    %s14 = sadd.s32 1, %s10
  $region7: #{basic_block_1w4a_forward.1} parent=0 // loop_footer_branch
    %9 = sbr.rel target = $region3
  $region8: #{basic_block_1w4a_forward.1} parent=0 // loop_exit
    _

</llo_original>
